<compile_context>
chip_gen: v7x
topology: tpu7x:2x2x1
jax: 0.10.0
libtpu: 0.0.40
codegen_flags: <defaults>
</compile_context>

<pallas_src>
import math
import functools

import numpy as np
import jax
import jax.numpy as jnp
from jax.experimental import pallas as pl
from jax.experimental.pallas import tpu as pltpu


class Config:
    d_hidn = 32
    n_head = 4
    d_head = 8
    dropout = 0.0  # inference: dropout == identity


# ---------------------------------------------------------------------------
# Relative position bias (pure-JAX glue, matches torch _relative_position_bucket)
# ---------------------------------------------------------------------------
def _relative_position_bucket(relative_position, bidirectional,
                              num_buckets=32, max_distance=128):
    ret = jnp.zeros_like(relative_position)
    n = -relative_position
    if bidirectional:
        num_buckets //= 2
        ret = ret + (n < 0).astype(jnp.int32) * num_buckets
        n = jnp.abs(n)
    else:
        n = jnp.maximum(n, 0)
    max_exact = num_buckets // 2
    is_small = n < max_exact
    # log(max(n,1)) avoids -inf; those entries are overwritten by the `where` below
    val_if_large = max_exact + (
        jnp.log(jnp.maximum(n, 1).astype(jnp.float32) / max_exact)
        / math.log(max_distance / max_exact)
        * (num_buckets - max_exact)
    ).astype(jnp.int32)
    val_if_large = jnp.minimum(val_if_large, num_buckets - 1)
    ret = ret + jnp.where(is_small, n, val_if_large)
    return ret


def compute_position_bias(qlen, klen, rel_emb, bidirectional):
    ctx_pos = jnp.arange(qlen, dtype=jnp.int32)[:, None]
    mem_pos = jnp.arange(klen, dtype=jnp.int32)[None, :]
    relative_position = mem_pos - ctx_pos
    rp_bucket = _relative_position_bucket(relative_position, bidirectional)
    values = rel_emb[rp_bucket]                  # (qlen, klen, n_head)
    return jnp.transpose(values, (2, 0, 1))      # (n_head, qlen, klen)


# ---------------------------------------------------------------------------
# Generation-aware VMEM budget (v7x has 64 MiB/TC; v5e/v6e have 128 MiB)
# ---------------------------------------------------------------------------
def _tpu_vmem_limit_bytes():
    cap = 128 << 20
    try:
        info = pltpu.get_tpu_info()
        cap = int(getattr(info, "vmem_capacity_bytes", cap))
    except Exception:
        pass
    # ~3/4 of physical, capped: 48 MiB on v7x, 96 MiB on v5e/v6e -- leaves
    # headroom for compiler-internal scratch.
    return int(min((cap * 3) // 4, 100 << 20))


# ---------------------------------------------------------------------------
# Block-size heuristic (batch-block per grid step)
# ---------------------------------------------------------------------------
def _pick_batch_block(B, S, D, H, Dh, prob_bytes, vmem_budget):
    """Choose how many batch elements each grid step handles.

    * feed >= ~256 rows into each projection matmul (MXU M dim),
    * keep >= 2 grid steps (and preferably an even count) so both v7x
      TensorCores get balanced work via the "parallel" grid axis,
    * keep the per-step footprint (including the previously-omitted bias,
      weights and mask/prob buffers) inside the generation-aware VMEM budget.
    """
    target_rows = 256
    bt = max(1, min(B, target_rows // max(S, 1)))
    if B >= 2:
        bt = min(bt, max(1, B // 2))        # keep >= 2 grid steps

    def step_bytes(b):
        qkv = 3 * b * S * D * 4             # Q/K/V blocks (input dtype <= f32)
        msk = b * S * S * 1                 # int8 mask block
        out = b * S * D * 4                 # output block (f32)
        prb = b * H * S * S * prob_bytes    # attention-prob block
        var = 2 * (qkv + msk + out + prb)   # x2: double buffering
        bias = 2 * H * S * S * 2            # bf16 position bias (double-buffered)
        wgts = 2 * 4 * (3 * D * H * Dh + H * Dh * D + 3 * H * Dh + D)
        return var + bias + wgts

    while bt > 1 and step_bytes(bt) > vmem_budget:
        bt -= 1
    while B % bt != 0:                      # require clean batch blocking
        bt -= 1
    # Prefer an even number of grid steps (v7x: 2 TensorCores share the
    # "parallel" axis); fall back gracefully when B makes that impossible.
    if (B // bt) % 2 != 0:
        for cand in range(bt, 0, -1):
            if B % cand == 0 and (B // cand) % 2 == 0 and step_bytes(cand) <= vmem_budget:
                bt = cand
                break
    return max(bt, 1)


# ---------------------------------------------------------------------------
# Pallas kernel: batch-blocked QKV projection + attention + output projection
# ---------------------------------------------------------------------------
def mha_kernel(q_ref, k_ref, v_ref, mask_ref, bias_ref,
               wq_ref, bq_ref, wk_ref, bk_ref, wv_ref, bv_ref,
               wo_ref, bo_ref,
               out_ref, prob_ref,
               *, n_head, d_head, bt, seq, d_model):
    n = bt * seq
    cdt = jnp.bfloat16

    # Cast activations to bf16 in-kernel (VPU filler under the MXU); the wrapper
    # no longer burns an extra HBM pass on the cast.
    xq = q_ref[...].reshape(n, d_model).astype(cdt)
    xk = k_ref[...].reshape(n, d_model).astype(cdt)
    xv = v_ref[...].reshape(n, d_model).astype(cdt)

    # Full-width projections hoisted out of the head loop (M = Bt*S, N = H*Dh).
    # Softmax scale is already folded into Wq / bq on the host.
    q_all = jnp.dot(xq, wq_ref[...].astype(cdt),
                    preferred_element_type=jnp.float32) + bq_ref[...]
    k_all = jnp.dot(xk, wk_ref[...].astype(cdt),
                    preferred_element_type=jnp.float32) + bk_ref[...]
    v_all = jnp.dot(xv, wv_ref[...].astype(cdt),
                    preferred_element_type=jnp.float32) + bv_ref[...]

    # Compact int8 mask -> boolean; masked_fill semantics applied below
    # (matches torch scores.masked_fill_(attn_mask, -1e9)).
    masked = mask_ref[...].astype(jnp.int32) != 0            # (Bt, S, S)

    out_acc = jnp.zeros((n, d_model), jnp.float32)

    # Short static unroll over heads (H is small & static; each iteration's
    # temporaries are consumed within the iteration, so liveness stays bounded).
    for h in range(n_head):
        sl = slice(h * d_head, (h + 1) * d_head)
        qh = q_all[:, sl].reshape(bt, seq, d_head).astype(cdt)
        kh = k_all[:, sl].reshape(bt, seq, d_head).astype(cdt)
        vh = v_all[:, sl].reshape(bt, seq, d_head).astype(cdt)

        # Batched (over the batch block) score matmul, f32 accumulation.
        scores = jnp.einsum('bqd,bkd->bqk', qh, kh,
                            preferred_element_type=jnp.float32)
        scores = scores + bias_ref[h].astype(jnp.float32)     # bias broadcasts over Bt
        scores = jnp.where(masked, jnp.float32(-1e9), scores)  # masked_fill_

        # Numerically stable softmax along keys; EXACT division for the stored
        # probabilities (rows sum to 1 like torch softmax).
        scores = scores - jnp.max(scores, axis=-1, keepdims=True)
        e = jnp.exp(scores)
        probs = e / jnp.sum(e, axis=-1, keepdims=True)

        prob_ref[:, h:h + 1, :, :] = probs[:, None, :, :].astype(prob_ref.dtype)

        ctx_h = jnp.einsum('bqk,bkd->bqd', probs.astype(cdt), vh,
                           preferred_element_type=jnp.float32)
        # Fold this head's context straight into the output projection:
        # out = ctx @ Wo == sum_h ctx_h @ Wo[h*Dh:(h+1)*Dh, :]  (no ctx scratch,
        # no masked 8-lane VMEM stores, no concatenate).
        out_acc = out_acc + jnp.dot(ctx_h.reshape(n, d_head).astype(cdt),
                                    wo_ref[sl, :].astype(cdt),
                                    preferred_element_type=jnp.float32)

    out_acc = out_acc + bo_ref[...]
    out_ref[...] = out_acc.reshape(bt, seq, d_model).astype(out_ref.dtype)


def multi_head_attention(Q, K, V, attn_mask, params, cfg, bidirectional=False,
                         probs_dtype=jnp.bfloat16):
    B, S, D = Q.shape
    H, Dh = cfg.n_head, cfg.d_head
    scale = 1.0 / math.sqrt(Dh)

    vmem_limit = _tpu_vmem_limit_bytes()
    prob_bytes = jnp.dtype(probs_dtype).itemsize
    bt = _pick_batch_block(B, S, D, H, Dh, prob_bytes,
                           vmem_budget=(vmem_limit * 3) // 4)
    grid = (B // bt,)

    # Host/XLA-side prep (all tiny, weight-sized): bias table, scale folding,
    # compact int8 mask.  The large Q/K/V activations are passed through in
    # their original dtype (no wrapper-side cast pass over HBM).
    bias = compute_position_bias(S, S, params["rel_emb"], bidirectional)
    bias = bias.astype(jnp.bfloat16)                              # (H,S,S)
    mask_i8 = attn_mask.astype(jnp.int8)                          # 1 byte/elem

    wq = (params["Wq"] * scale).astype(jnp.float32)               # scale folded in
    bq = (params["bq"] * scale).reshape(1, H * Dh).astype(jnp.float32)
    wk = params["Wk"].astype(jnp.float32)
    bk = params["bk"].reshape(1, H * Dh).astype(jnp.float32)
    wv = params["Wv"].astype(jnp.float32)
    bv = params["bv"].reshape(1, H * Dh).astype(jnp.float32)
    wo = params["Wo"].astype(jnp.float32)                         # (H*Dh, D)
    bo = params["bo"].reshape(1, D).astype(jnp.float32)

    kernel = functools.partial(mha_kernel, n_head=H, d_head=Dh,
                               bt=bt, seq=S, d_model=D)

    grid_spec = pltpu.PrefetchScalarGridSpec(
        num_scalar_prefetch=0,
        grid=grid,
        in_specs=[
            pl.BlockSpec((bt, S, D), lambda b: (b, 0, 0)),      # Q (orig dtype)
            pl.BlockSpec((bt, S, D), lambda b: (b, 0, 0)),      # K
            pl.BlockSpec((bt, S, D), lambda b: (b, 0, 0)),      # V
            pl.BlockSpec((bt, S, S), lambda b: (b, 0, 0)),      # mask (int8)
            pl.BlockSpec((H, S, S), lambda b: (0, 0, 0)),       # position bias (bf16)
            pl.BlockSpec((D, H * Dh), lambda b: (0, 0)),        # Wq (scale folded)
            pl.BlockSpec((1, H * Dh), lambda b: (0, 0)),        # bq (scale folded)
            pl.BlockSpec((D, H * Dh), lambda b: (0, 0)),        # Wk
            pl.BlockSpec((1, H * Dh), lambda b: (0, 0)),        # bk
            pl.BlockSpec((D, H * Dh), lambda b: (0, 0)),        # Wv
            pl.BlockSpec((1, H * Dh), lambda b: (0, 0)),        # bv
            pl.BlockSpec((H * Dh, D), lambda b: (0, 0)),        # Wo
            pl.BlockSpec((1, D), lambda b: (0, 0)),             # bo
        ],
        out_specs=[
            pl.BlockSpec((bt, S, D), lambda b: (b, 0, 0)),          # output
            pl.BlockSpec((bt, H, S, S), lambda b: (b, 0, 0, 0)),    # attn_prob
        ],
    )

    out_shapes = (
        jax.ShapeDtypeStruct((B, S, D), Q.dtype),
        jax.ShapeDtypeStruct((B, H, S, S), probs_dtype),
    )

    return pl.pallas_call(
        kernel,
        out_shape=out_shapes,
        grid_spec=grid_spec,
        compiler_params=pltpu.CompilerParams(
            dimension_semantics=("parallel",),
            vmem_limit_bytes=vmem_limit,
        ),
    )(Q, K, V, mask_i8, bias, wq, bq, wk, bk, wv, bv, wo, bo)


# ---------------------------------------------------------------------------
# Pure-JAX reference (f32, for correctness check)
# ---------------------------------------------------------------------------
def reference_mha(Q, K, V, attn_mask, params, cfg, bidirectional=False):
    B, S, D = Q.shape
    H, Dh = cfg.n_head, cfg.d_head
    scale = 1.0 / math.sqrt(Dh)

    def proj(x, W, b):
        return (x @ W + b).reshape(B, S, H, Dh).transpose(0, 2, 1, 3)

    q = proj(Q, params["Wq"], params["bq"])
    k = proj(K, params["Wk"], params["bk"])
    v = proj(V, params["Wv"], params["bv"])

    scores = jnp.einsum("bhqd,bhkd->bhqk", q, k) * scale
    bias = compute_position_bias(S, S, params["rel_emb"], bidirectional)[None]
    scores = scores + bias
    scores = jnp.where(attn_mask[:, None, :, :], -1e9, scores)
    probs = jax.nn.softmax(scores, axis=-1)
    ctx = jnp.einsum("bhqk,bhkd->bhqd", probs, v)
    ctx = ctx.transpose(0, 2, 1, 3).reshape(B, S, H * Dh)
    out = ctx @ params["Wo"] + params["bo"]
    return out, probs


if __name__ == "__main__":
    cfg = Config()
    B, S = 4, 8
    D, H, Dh = cfg.d_hidn, cfg.n_head, cfg.d_head

    key = jax.random.PRNGKey(0)
    ks = jax.random.split(key, 12)

    def lin_init(kw, kb, fan_in, shape_w, shape_b):
        bound = 1.0 / math.sqrt(fan_in)
        W = jax.random.uniform(kw, shape_w, jnp.float32, -bound, bound)
        b = jax.random.uniform(kb, shape_b, jnp.float32, -bound, bound)
        return W, b

    Wq, bq = lin_init(ks[0], ks[1], D, (D, H * Dh), (H * Dh,))
    Wk, bk = lin_init(ks[2], ks[3], D, (D, H * Dh), (H * Dh,))
    Wv, bv = lin_init(ks[4], ks[5], D, (D, H * Dh), (H * Dh,))
    Wo, bo = lin_init(ks[6], ks[7], H * Dh, (H * Dh, D), (D,))
    rel_emb = jax.random.normal(ks[8], (32, H), jnp.float32)  # Embedding(32, n_head)

    params = dict(Wq=Wq, bq=bq, Wk=Wk, bk=bk, Wv=Wv, bv=bv, Wo=Wo, bo=bo,
                  rel_emb=rel_emb)

    Q = jax.random.normal(ks[9], (B, S, D), jnp.float32)
    K = jax.random.normal(ks[10], (B, S, D), jnp.float32)
    V = jax.random.normal(ks[11], (B, S, D), jnp.float32)
    # causal mask: True = masked (future positions)
    attn_mask = jnp.broadcast_to(
        jnp.triu(jnp.ones((S, S), dtype=bool), k=1), (B, S, S))

    out, probs = multi_head_attention(Q, K, V, attn_mask, params, cfg,
                                      bidirectional=False)
    out = jax.block_until_ready(out)
    probs = jax.block_until_ready(probs)

    ref_out, ref_probs = reference_mha(Q, K, V, attn_mask, params, cfg,
                                       bidirectional=False)

    # Tolerances reflect bf16 matmul inputs / bf16 bias / bf16 stored probs in
    # the kernel vs the pure-f32 reference (accumulation is f32 throughout).
    np.testing.assert_allclose(np.asarray(out), np.asarray(ref_out),
                               rtol=2e-2, atol=2e-2)
    np.testing.assert_allclose(np.asarray(probs.astype(jnp.float32)),
                               np.asarray(ref_probs),
                               rtol=2e-2, atol=2e-2)

    print("KERNEL_OK")
</pallas_src>

<mosaic_0001>
module attributes {stable_mosaic.version = 11 : i64} {
  func.func @mha_kernel(%arg0: i32, %arg1: memref<2x8x32xf32, #tpu.memory_space<vmem>>, %arg2: memref<2x8x32xf32, #tpu.memory_space<vmem>>, %arg3: memref<2x8x32xf32, #tpu.memory_space<vmem>>, %arg4: memref<2x8x8xi8, #tpu.memory_space<vmem>>, %arg5: memref<4x8x8xbf16, #tpu.memory_space<vmem>>, %arg6: memref<32x32xf32, #tpu.memory_space<vmem>>, %arg7: memref<1x32xf32, #tpu.memory_space<vmem>>, %arg8: memref<32x32xf32, #tpu.memory_space<vmem>>, %arg9: memref<1x32xf32, #tpu.memory_space<vmem>>, %arg10: memref<32x32xf32, #tpu.memory_space<vmem>>, %arg11: memref<1x32xf32, #tpu.memory_space<vmem>>, %arg12: memref<32x32xf32, #tpu.memory_space<vmem>>, %arg13: memref<1x32xf32, #tpu.memory_space<vmem>>, %arg14: memref<2x8x32xf32, #tpu.memory_space<vmem>>, %arg15: memref<2x4x8x8xbf16, #tpu.memory_space<vmem>>) attributes {dimension_semantics = [#tpu.dimension_semantics<parallel>], iteration_bounds = array<i64: 2>, scalar_prefetch = 0 : i64, scratch_operands = 0 : i64, tpu.core_type = #tpu.core_type<tc>, window_params = [{transform_indices = @transform_0, window_bounds = array<i64: 2, 8, 32>}, {transform_indices = @transform_1, window_bounds = array<i64: 2, 8, 32>}, {transform_indices = @transform_2, window_bounds = array<i64: 2, 8, 32>}, {transform_indices = @transform_3, window_bounds = array<i64: 2, 8, 8>}, {pipeline_mode = #tpu.pipeline_mode<synchronous>, transform_indices = @transform_4, window_bounds = array<i64: 4, 8, 8>}, {pipeline_mode = #tpu.pipeline_mode<synchronous>, transform_indices = @transform_5, window_bounds = array<i64: 32, 32>}, {pipeline_mode = #tpu.pipeline_mode<synchronous>, transform_indices = @transform_6, window_bounds = array<i64: 1, 32>}, {pipeline_mode = #tpu.pipeline_mode<synchronous>, transform_indices = @transform_7, window_bounds = array<i64: 32, 32>}, {pipeline_mode = #tpu.pipeline_mode<synchronous>, transform_indices = @transform_8, window_bounds = array<i64: 1, 32>}, {pipeline_mode = #tpu.pipeline_mode<synchronous>, transform_indices = @transform_9, window_bounds = array<i64: 32, 32>}, {pipeline_mode = #tpu.pipeline_mode<synchronous>, transform_indices = @transform_10, window_bounds = array<i64: 1, 32>}, {pipeline_mode = #tpu.pipeline_mode<synchronous>, transform_indices = @transform_11, window_bounds = array<i64: 32, 32>}, {pipeline_mode = #tpu.pipeline_mode<synchronous>, transform_indices = @transform_12, window_bounds = array<i64: 1, 32>}, {transform_indices = @transform_13, window_bounds = array<i64: 2, 8, 32>}, {transform_indices = @transform_14, window_bounds = array<i64: 2, 4, 8, 8>}]} {
    %c0 = arith.constant 0 : index
    %c0_0 = arith.constant 0 : index
    %c0_1 = arith.constant 0 : index
    %0 = vector.load %arg1[%c0, %c0_0, %c0_1] : memref<2x8x32xf32, #tpu.memory_space<vmem>>, vector<2x8x32xf32>
    %1 = vector.shape_cast %0 : vector<2x8x32xf32> to vector<16x32xf32>
    %2 = arith.truncf %1 : vector<16x32xf32> to vector<16x32xbf16>
    %c0_2 = arith.constant 0 : index
    %c0_3 = arith.constant 0 : index
    %c0_4 = arith.constant 0 : index
    %3 = vector.load %arg2[%c0_2, %c0_3, %c0_4] : memref<2x8x32xf32, #tpu.memory_space<vmem>>, vector<2x8x32xf32>
    %4 = vector.shape_cast %3 : vector<2x8x32xf32> to vector<16x32xf32>
    %5 = arith.truncf %4 : vector<16x32xf32> to vector<16x32xbf16>
    %c0_5 = arith.constant 0 : index
    %c0_6 = arith.constant 0 : index
    %c0_7 = arith.constant 0 : index
    %6 = vector.load %arg3[%c0_5, %c0_6, %c0_7] : memref<2x8x32xf32, #tpu.memory_space<vmem>>, vector<2x8x32xf32>
    %7 = vector.shape_cast %6 : vector<2x8x32xf32> to vector<16x32xf32>
    %8 = arith.truncf %7 : vector<16x32xf32> to vector<16x32xbf16>
    %c0_8 = arith.constant 0 : index
    %c0_9 = arith.constant 0 : index
    %9 = vector.load %arg6[%c0_8, %c0_9] : memref<32x32xf32, #tpu.memory_space<vmem>>, vector<32x32xf32>
    %10 = arith.truncf %9 : vector<32x32xf32> to vector<32x32xbf16>
    %cst = arith.constant dense<0.000000e+00> : vector<16x32xf32>
    %11 = tpu.matmul %2, %10, %cst {dimension_numbers = #tpu.dot_dimension_numbers<[1], [0], [0], [1], [0, 0, 1, 1], [], []>} : vector<16x32xbf16>, vector<32x32xbf16>, vector<16x32xf32> -> vector<16x32xf32>
    %c0_10 = arith.constant 0 : index
    %c0_11 = arith.constant 0 : index
    %12 = vector.load %arg7[%c0_10, %c0_11] : memref<1x32xf32, #tpu.memory_space<vmem>>, vector<1x32xf32>
    %13 = vector.broadcast %12 : vector<1x32xf32> to vector<16x32xf32>
    %14 = arith.addf %11, %13 : vector<16x32xf32>
    %c0_12 = arith.constant 0 : index
    %c0_13 = arith.constant 0 : index
    %15 = vector.load %arg8[%c0_12, %c0_13] : memref<32x32xf32, #tpu.memory_space<vmem>>, vector<32x32xf32>
    %16 = arith.truncf %15 : vector<32x32xf32> to vector<32x32xbf16>
    %cst_14 = arith.constant dense<0.000000e+00> : vector<16x32xf32>
    %17 = tpu.matmul %5, %16, %cst_14 {dimension_numbers = #tpu.dot_dimension_numbers<[1], [0], [0], [1], [0, 0, 1, 1], [], []>} : vector<16x32xbf16>, vector<32x32xbf16>, vector<16x32xf32> -> vector<16x32xf32>
    %c0_15 = arith.constant 0 : index
    %c0_16 = arith.constant 0 : index
    %18 = vector.load %arg9[%c0_15, %c0_16] : memref<1x32xf32, #tpu.memory_space<vmem>>, vector<1x32xf32>
    %19 = vector.broadcast %18 : vector<1x32xf32> to vector<16x32xf32>
    %20 = arith.addf %17, %19 : vector<16x32xf32>
    %c0_17 = arith.constant 0 : index
    %c0_18 = arith.constant 0 : index
    %21 = vector.load %arg10[%c0_17, %c0_18] : memref<32x32xf32, #tpu.memory_space<vmem>>, vector<32x32xf32>
    %22 = arith.truncf %21 : vector<32x32xf32> to vector<32x32xbf16>
    %cst_19 = arith.constant dense<0.000000e+00> : vector<16x32xf32>
    %23 = tpu.matmul %8, %22, %cst_19 {dimension_numbers = #tpu.dot_dimension_numbers<[1], [0], [0], [1], [0, 0, 1, 1], [], []>} : vector<16x32xbf16>, vector<32x32xbf16>, vector<16x32xf32> -> vector<16x32xf32>
    %c0_20 = arith.constant 0 : index
    %c0_21 = arith.constant 0 : index
    %24 = vector.load %arg11[%c0_20, %c0_21] : memref<1x32xf32, #tpu.memory_space<vmem>>, vector<1x32xf32>
    %25 = vector.broadcast %24 : vector<1x32xf32> to vector<16x32xf32>
    %26 = arith.addf %23, %25 : vector<16x32xf32>
    %c0_22 = arith.constant 0 : index
    %c0_23 = arith.constant 0 : index
    %c0_24 = arith.constant 0 : index
    %27 = vector.load %arg4[%c0_22, %c0_23, %c0_24] : memref<2x8x8xi8, #tpu.memory_space<vmem>>, vector<2x8x8xi8>
    %28 = arith.extsi %27 : vector<2x8x8xi8> to vector<2x8x8xi32>
    %c0_i32 = arith.constant 0 : i32
    %29 = vector.broadcast %c0_i32 : i32 to vector<2x8x8xi32>
    %30 = arith.cmpi ne, %28, %29 : vector<2x8x8xi32>
    %cst_25 = arith.constant 0.000000e+00 : f32
    %31 = vector.broadcast %cst_25 : f32 to vector<16x32xf32>
    %32 = vector.extract_strided_slice %14 {offsets = [0, 0], sizes = [16, 8], strides = [1, 1]} : vector<16x32xf32> to vector<16x8xf32>
    %33 = vector.shape_cast %32 : vector<16x8xf32> to vector<2x8x8xf32>
    %34 = arith.truncf %33 : vector<2x8x8xf32> to vector<2x8x8xbf16>
    %35 = vector.extract_strided_slice %20 {offsets = [0, 0], sizes = [16, 8], strides = [1, 1]} : vector<16x32xf32> to vector<16x8xf32>
    %36 = vector.shape_cast %35 : vector<16x8xf32> to vector<2x8x8xf32>
    %37 = arith.truncf %36 : vector<2x8x8xf32> to vector<2x8x8xbf16>
    %38 = vector.extract_strided_slice %26 {offsets = [0, 0], sizes = [16, 8], strides = [1, 1]} : vector<16x32xf32> to vector<16x8xf32>
    %39 = vector.shape_cast %38 : vector<16x8xf32> to vector<2x8x8xf32>
    %40 = arith.truncf %39 : vector<2x8x8xf32> to vector<2x8x8xbf16>
    "tpu.trace_start"() <{level = 10 : i32, message = "bqd,bkd->bqk"}> : () -> ()
    %cst_26 = arith.constant dense<0.000000e+00> : vector<2x8x8xf32>
    %41 = tpu.matmul %34, %37, %cst_26 {dimension_numbers = #tpu.dot_dimension_numbers<[2], [2], [1], [1], [0, 0, 0, 1, 1, 1], [0], [0]>} : vector<2x8x8xbf16>, vector<2x8x8xbf16>, vector<2x8x8xf32> -> vector<2x8x8xf32>
    "tpu.trace_stop"() : () -> ()
    %c0_27 = arith.constant 0 : index
    %c0_28 = arith.constant 0 : index
    %c0_29 = arith.constant 0 : index
    %42 = vector.load %arg5[%c0_27, %c0_28, %c0_29] : memref<4x8x8xbf16, #tpu.memory_space<vmem>>, vector<1x8x8xbf16>
    %43 = vector.shape_cast %42 : vector<1x8x8xbf16> to vector<8x8xbf16>
    %44 = arith.extf %43 : vector<8x8xbf16> to vector<8x8xf32>
    %45 = vector.shape_cast %44 : vector<8x8xf32> to vector<1x8x8xf32>
    %46 = vector.broadcast %45 : vector<1x8x8xf32> to vector<2x8x8xf32>
    %47 = arith.addf %41, %46 : vector<2x8x8xf32>
    %cst_30 = arith.constant -1.000000e+09 : f32
    %48 = vector.broadcast %cst_30 : f32 to vector<2x8x8xf32>
    %49 = arith.select %30, %48, %47 : vector<2x8x8xi1>, vector<2x8x8xf32>
    %cst_31 = arith.constant dense<0xFF800000> : vector<2x8xf32>
    %50 = vector.multi_reduction <maximumf>, %49, %cst_31 [2] : vector<2x8x8xf32> to vector<2x8xf32>
    %51 = vector.shape_cast %50 : vector<2x8xf32> to vector<2x8x1xf32>
    %52 = vector.broadcast %51 : vector<2x8x1xf32> to vector<2x8x8xf32>
    %53 = arith.subf %49, %52 : vector<2x8x8xf32>
    %54 = math.exp %53 : vector<2x8x8xf32>
    %cst_32 = arith.constant dense<0.000000e+00> : vector<2x8xf32>
    %55 = vector.multi_reduction <add>, %54, %cst_32 [2] : vector<2x8x8xf32> to vector<2x8xf32>
    %56 = vector.shape_cast %55 : vector<2x8xf32> to vector<2x8x1xf32>
    %57 = vector.broadcast %56 : vector<2x8x1xf32> to vector<2x8x8xf32>
    %58 = arith.divf %54, %57 : vector<2x8x8xf32>
    %59 = vector.shape_cast %58 : vector<2x8x8xf32> to vector<2x1x8x8xf32>
    %60 = arith.truncf %59 : vector<2x1x8x8xf32> to vector<2x1x8x8xbf16>
    %c0_33 = arith.constant 0 : index
    %c0_34 = arith.constant 0 : index
    %c0_35 = arith.constant 0 : index
    %c0_36 = arith.constant 0 : index
    %61 = vector.load %arg15[%c0_33, %c0_34, %c0_35, %c0_36] : memref<2x4x8x8xbf16, #tpu.memory_space<vmem>>, vector<2x1x8x8xbf16>
    tpu.vector_store %arg15[%c0_33, %c0_34, %c0_35, %c0_36], %60 {strides = array<i32>} : memref<2x4x8x8xbf16, #tpu.memory_space<vmem>>, vector<2x1x8x8xbf16>,
    %62 = arith.truncf %58 : vector<2x8x8xf32> to vector<2x8x8xbf16>
    "tpu.trace_start"() <{level = 10 : i32, message = "bqk,bkd->bqd"}> : () -> ()
    %cst_37 = arith.constant dense<0.000000e+00> : vector<2x8x8xf32>
    %63 = tpu.matmul %62, %40, %cst_37 {dimension_numbers = #tpu.dot_dimension_numbers<[2], [1], [1], [2], [0, 0, 0, 1, 1, 2], [0], [0]>} : vector<2x8x8xbf16>, vector<2x8x8xbf16>, vector<2x8x8xf32> -> vector<2x8x8xf32>
    "tpu.trace_stop"() : () -> ()
    %64 = vector.shape_cast %63 : vector<2x8x8xf32> to vector<16x8xf32>
    %65 = arith.truncf %64 : vector<16x8xf32> to vector<16x8xbf16>
    %c0_38 = arith.constant 0 : index
    %c0_39 = arith.constant 0 : index
    %66 = vector.load %arg12[%c0_38, %c0_39] : memref<32x32xf32, #tpu.memory_space<vmem>>, vector<8x32xf32>
    %67 = arith.truncf %66 : vector<8x32xf32> to vector<8x32xbf16>
    %cst_40 = arith.constant dense<0.000000e+00> : vector<16x32xf32>
    %68 = tpu.matmul %65, %67, %cst_40 {dimension_numbers = #tpu.dot_dimension_numbers<[1], [0], [0], [1], [0, 0, 1, 1], [], []>} : vector<16x8xbf16>, vector<8x32xbf16>, vector<16x32xf32> -> vector<16x32xf32>
    %69 = arith.addf %31, %68 : vector<16x32xf32>
    %70 = vector.extract_strided_slice %14 {offsets = [0, 8], sizes = [16, 8], strides = [1, 1]} : vector<16x32xf32> to vector<16x8xf32>
    %71 = vector.shape_cast %70 : vector<16x8xf32> to vector<2x8x8xf32>
    %72 = arith.truncf %71 : vector<2x8x8xf32> to vector<2x8x8xbf16>
    %73 = vector.extract_strided_slice %20 {offsets = [0, 8], sizes = [16, 8], strides = [1, 1]} : vector<16x32xf32> to vector<16x8xf32>
    %74 = vector.shape_cast %73 : vector<16x8xf32> to vector<2x8x8xf32>
    %75 = arith.truncf %74 : vector<2x8x8xf32> to vector<2x8x8xbf16>
    %76 = vector.extract_strided_slice %26 {offsets = [0, 8], sizes = [16, 8], strides = [1, 1]} : vector<16x32xf32> to vector<16x8xf32>
    %77 = vector.shape_cast %76 : vector<16x8xf32> to vector<2x8x8xf32>
    %78 = arith.truncf %77 : vector<2x8x8xf32> to vector<2x8x8xbf16>
    "tpu.trace_start"() <{level = 10 : i32, message = "bqd,bkd->bqk"}> : () -> ()
    %cst_41 = arith.constant dense<0.000000e+00> : vector<2x8x8xf32>
    %79 = tpu.matmul %72, %75, %cst_41 {dimension_numbers = #tpu.dot_dimension_numbers<[2], [2], [1], [1], [0, 0, 0, 1, 1, 1], [0], [0]>} : vector<2x8x8xbf16>, vector<2x8x8xbf16>, vector<2x8x8xf32> -> vector<2x8x8xf32>
    "tpu.trace_stop"() : () -> ()
    %c1 = arith.constant 1 : index
    %c0_42 = arith.constant 0 : index
    %c0_43 = arith.constant 0 : index
    %80 = vector.load %arg5[%c1, %c0_42, %c0_43] : memref<4x8x8xbf16, #tpu.memory_space<vmem>>, vector<1x8x8xbf16>
    %81 = vector.shape_cast %80 : vector<1x8x8xbf16> to vector<8x8xbf16>
    %82 = arith.extf %81 : vector<8x8xbf16> to vector<8x8xf32>
    %83 = vector.shape_cast %82 : vector<8x8xf32> to vector<1x8x8xf32>
    %84 = vector.broadcast %83 : vector<1x8x8xf32> to vector<2x8x8xf32>
    %85 = arith.addf %79, %84 : vector<2x8x8xf32>
    %cst_44 = arith.constant -1.000000e+09 : f32
    %86 = vector.broadcast %cst_44 : f32 to vector<2x8x8xf32>
    %87 = arith.select %30, %86, %85 : vector<2x8x8xi1>, vector<2x8x8xf32>
    %cst_45 = arith.constant dense<0xFF800000> : vector<2x8xf32>
    %88 = vector.multi_reduction <maximumf>, %87, %cst_45 [2] : vector<2x8x8xf32> to vector<2x8xf32>
    %89 = vector.shape_cast %88 : vector<2x8xf32> to vector<2x8x1xf32>
    %90 = vector.broadcast %89 : vector<2x8x1xf32> to vector<2x8x8xf32>
    %91 = arith.subf %87, %90 : vector<2x8x8xf32>
    %92 = math.exp %91 : vector<2x8x8xf32>
    %cst_46 = arith.constant dense<0.000000e+00> : vector<2x8xf32>
    %93 = vector.multi_reduction <add>, %92, %cst_46 [2] : vector<2x8x8xf32> to vector<2x8xf32>
    %94 = vector.shape_cast %93 : vector<2x8xf32> to vector<2x8x1xf32>
    %95 = vector.broadcast %94 : vector<2x8x1xf32> to vector<2x8x8xf32>
    %96 = arith.divf %92, %95 : vector<2x8x8xf32>
    %97 = vector.shape_cast %96 : vector<2x8x8xf32> to vector<2x1x8x8xf32>
    %98 = arith.truncf %97 : vector<2x1x8x8xf32> to vector<2x1x8x8xbf16>
    %c0_47 = arith.constant 0 : index
    %c1_48 = arith.constant 1 : index
    %c0_49 = arith.constant 0 : index
    %c0_50 = arith.constant 0 : index
    %99 = vector.load %arg15[%c0_47, %c1_48, %c0_49, %c0_50] : memref<2x4x8x8xbf16, #tpu.memory_space<vmem>>, vector<2x1x8x8xbf16>
    tpu.vector_store %arg15[%c0_47, %c1_48, %c0_49, %c0_50], %98 {strides = array<i32>} : memref<2x4x8x8xbf16, #tpu.memory_space<vmem>>, vector<2x1x8x8xbf16>,
    %100 = arith.truncf %96 : vector<2x8x8xf32> to vector<2x8x8xbf16>
    "tpu.trace_start"() <{level = 10 : i32, message = "bqk,bkd->bqd"}> : () -> ()
    %cst_51 = arith.constant dense<0.000000e+00> : vector<2x8x8xf32>
    %101 = tpu.matmul %100, %78, %cst_51 {dimension_numbers = #tpu.dot_dimension_numbers<[2], [1], [1], [2], [0, 0, 0, 1, 1, 2], [0], [0]>} : vector<2x8x8xbf16>, vector<2x8x8xbf16>, vector<2x8x8xf32> -> vector<2x8x8xf32>
    "tpu.trace_stop"() : () -> ()
    %102 = vector.shape_cast %101 : vector<2x8x8xf32> to vector<16x8xf32>
    %103 = arith.truncf %102 : vector<16x8xf32> to vector<16x8xbf16>
    %c8 = arith.constant 8 : index
    %c0_52 = arith.constant 0 : index
    %104 = vector.load %arg12[%c8, %c0_52] : memref<32x32xf32, #tpu.memory_space<vmem>>, vector<8x32xf32>
    %105 = arith.truncf %104 : vector<8x32xf32> to vector<8x32xbf16>
    %cst_53 = arith.constant dense<0.000000e+00> : vector<16x32xf32>
    %106 = tpu.matmul %103, %105, %cst_53 {dimension_numbers = #tpu.dot_dimension_numbers<[1], [0], [0], [1], [0, 0, 1, 1], [], []>} : vector<16x8xbf16>, vector<8x32xbf16>, vector<16x32xf32> -> vector<16x32xf32>
    %107 = arith.addf %69, %106 : vector<16x32xf32>
    %108 = vector.extract_strided_slice %14 {offsets = [0, 16], sizes = [16, 8], strides = [1, 1]} : vector<16x32xf32> to vector<16x8xf32>
    %109 = vector.shape_cast %108 : vector<16x8xf32> to vector<2x8x8xf32>
    %110 = arith.truncf %109 : vector<2x8x8xf32> to vector<2x8x8xbf16>
    %111 = vector.extract_strided_slice %20 {offsets = [0, 16], sizes = [16, 8], strides = [1, 1]} : vector<16x32xf32> to vector<16x8xf32>
    %112 = vector.shape_cast %111 : vector<16x8xf32> to vector<2x8x8xf32>
    %113 = arith.truncf %112 : vector<2x8x8xf32> to vector<2x8x8xbf16>
    %114 = vector.extract_strided_slice %26 {offsets = [0, 16], sizes = [16, 8], strides = [1, 1]} : vector<16x32xf32> to vector<16x8xf32>
    %115 = vector.shape_cast %114 : vector<16x8xf32> to vector<2x8x8xf32>
    %116 = arith.truncf %115 : vector<2x8x8xf32> to vector<2x8x8xbf16>
    "tpu.trace_start"() <{level = 10 : i32, message = "bqd,bkd->bqk"}> : () -> ()
    %cst_54 = arith.constant dense<0.000000e+00> : vector<2x8x8xf32>
    %117 = tpu.matmul %110, %113, %cst_54 {dimension_numbers = #tpu.dot_dimension_numbers<[2], [2], [1], [1], [0, 0, 0, 1, 1, 1], [0], [0]>} : vector<2x8x8xbf16>, vector<2x8x8xbf16>, vector<2x8x8xf32> -> vector<2x8x8xf32>
    "tpu.trace_stop"() : () -> ()
    %c2 = arith.constant 2 : index
    %c0_55 = arith.constant 0 : index
    %c0_56 = arith.constant 0 : index
    %118 = vector.load %arg5[%c2, %c0_55, %c0_56] : memref<4x8x8xbf16, #tpu.memory_space<vmem>>, vector<1x8x8xbf16>
    %119 = vector.shape_cast %118 : vector<1x8x8xbf16> to vector<8x8xbf16>
    %120 = arith.extf %119 : vector<8x8xbf16> to vector<8x8xf32>
    %121 = vector.shape_cast %120 : vector<8x8xf32> to vector<1x8x8xf32>
    %122 = vector.broadcast %121 : vector<1x8x8xf32> to vector<2x8x8xf32>
    %123 = arith.addf %117, %122 : vector<2x8x8xf32>
    %cst_57 = arith.constant -1.000000e+09 : f32
    %124 = vector.broadcast %cst_57 : f32 to vector<2x8x8xf32>
    %125 = arith.select %30, %124, %123 : vector<2x8x8xi1>, vector<2x8x8xf32>
    %cst_58 = arith.constant dense<0xFF800000> : vector<2x8xf32>
    %126 = vector.multi_reduction <maximumf>, %125, %cst_58 [2] : vector<2x8x8xf32> to vector<2x8xf32>
    %127 = vector.shape_cast %126 : vector<2x8xf32> to vector<2x8x1xf32>
    %128 = vector.broadcast %127 : vector<2x8x1xf32> to vector<2x8x8xf32>
    %129 = arith.subf %125, %128 : vector<2x8x8xf32>
    %130 = math.exp %129 : vector<2x8x8xf32>
    %cst_59 = arith.constant dense<0.000000e+00> : vector<2x8xf32>
    %131 = vector.multi_reduction <add>, %130, %cst_59 [2] : vector<2x8x8xf32> to vector<2x8xf32>
    %132 = vector.shape_cast %131 : vector<2x8xf32> to vector<2x8x1xf32>
    %133 = vector.broadcast %132 : vector<2x8x1xf32> to vector<2x8x8xf32>
    %134 = arith.divf %130, %133 : vector<2x8x8xf32>
    %135 = vector.shape_cast %134 : vector<2x8x8xf32> to vector<2x1x8x8xf32>
    %136 = arith.truncf %135 : vector<2x1x8x8xf32> to vector<2x1x8x8xbf16>
    %c0_60 = arith.constant 0 : index
    %c2_61 = arith.constant 2 : index
    %c0_62 = arith.constant 0 : index
    %c0_63 = arith.constant 0 : index
    %137 = vector.load %arg15[%c0_60, %c2_61, %c0_62, %c0_63] : memref<2x4x8x8xbf16, #tpu.memory_space<vmem>>, vector<2x1x8x8xbf16>
    tpu.vector_store %arg15[%c0_60, %c2_61, %c0_62, %c0_63], %136 {strides = array<i32>} : memref<2x4x8x8xbf16, #tpu.memory_space<vmem>>, vector<2x1x8x8xbf16>,
    %138 = arith.truncf %134 : vector<2x8x8xf32> to vector<2x8x8xbf16>
    "tpu.trace_start"() <{level = 10 : i32, message = "bqk,bkd->bqd"}> : () -> ()
    %cst_64 = arith.constant dense<0.000000e+00> : vector<2x8x8xf32>
    %139 = tpu.matmul %138, %116, %cst_64 {dimension_numbers = #tpu.dot_dimension_numbers<[2], [1], [1], [2], [0, 0, 0, 1, 1, 2], [0], [0]>} : vector<2x8x8xbf16>, vector<2x8x8xbf16>, vector<2x8x8xf32> -> vector<2x8x8xf32>
    "tpu.trace_stop"() : () -> ()
    %140 = vector.shape_cast %139 : vector<2x8x8xf32> to vector<16x8xf32>
    %141 = arith.truncf %140 : vector<16x8xf32> to vector<16x8xbf16>
    %c16 = arith.constant 16 : index
    %c0_65 = arith.constant 0 : index
    %142 = vector.load %arg12[%c16, %c0_65] : memref<32x32xf32, #tpu.memory_space<vmem>>, vector<8x32xf32>
    %143 = arith.truncf %142 : vector<8x32xf32> to vector<8x32xbf16>
    %cst_66 = arith.constant dense<0.000000e+00> : vector<16x32xf32>
    %144 = tpu.matmul %141, %143, %cst_66 {dimension_numbers = #tpu.dot_dimension_numbers<[1], [0], [0], [1], [0, 0, 1, 1], [], []>} : vector<16x8xbf16>, vector<8x32xbf16>, vector<16x32xf32> -> vector<16x32xf32>
    %145 = arith.addf %107, %144 : vector<16x32xf32>
    %146 = vector.extract_strided_slice %14 {offsets = [0, 24], sizes = [16, 8], strides = [1, 1]} : vector<16x32xf32> to vector<16x8xf32>
    %147 = vector.shape_cast %146 : vector<16x8xf32> to vector<2x8x8xf32>
    %148 = arith.truncf %147 : vector<2x8x8xf32> to vector<2x8x8xbf16>
    %149 = vector.extract_strided_slice %20 {offsets = [0, 24], sizes = [16, 8], strides = [1, 1]} : vector<16x32xf32> to vector<16x8xf32>
    %150 = vector.shape_cast %149 : vector<16x8xf32> to vector<2x8x8xf32>
    %151 = arith.truncf %150 : vector<2x8x8xf32> to vector<2x8x8xbf16>
    %152 = vector.extract_strided_slice %26 {offsets = [0, 24], sizes = [16, 8], strides = [1, 1]} : vector<16x32xf32> to vector<16x8xf32>
    %153 = vector.shape_cast %152 : vector<16x8xf32> to vector<2x8x8xf32>
    %154 = arith.truncf %153 : vector<2x8x8xf32> to vector<2x8x8xbf16>
    "tpu.trace_start"() <{level = 10 : i32, message = "bqd,bkd->bqk"}> : () -> ()
    %cst_67 = arith.constant dense<0.000000e+00> : vector<2x8x8xf32>
    %155 = tpu.matmul %148, %151, %cst_67 {dimension_numbers = #tpu.dot_dimension_numbers<[2], [2], [1], [1], [0, 0, 0, 1, 1, 1], [0], [0]>} : vector<2x8x8xbf16>, vector<2x8x8xbf16>, vector<2x8x8xf32> -> vector<2x8x8xf32>
    "tpu.trace_stop"() : () -> ()
    %c3 = arith.constant 3 : index
    %c0_68 = arith.constant 0 : index
    %c0_69 = arith.constant 0 : index
    %156 = vector.load %arg5[%c3, %c0_68, %c0_69] : memref<4x8x8xbf16, #tpu.memory_space<vmem>>, vector<1x8x8xbf16>
    %157 = vector.shape_cast %156 : vector<1x8x8xbf16> to vector<8x8xbf16>
    %158 = arith.extf %157 : vector<8x8xbf16> to vector<8x8xf32>
    %159 = vector.shape_cast %158 : vector<8x8xf32> to vector<1x8x8xf32>
    %160 = vector.broadcast %159 : vector<1x8x8xf32> to vector<2x8x8xf32>
    %161 = arith.addf %155, %160 : vector<2x8x8xf32>
    %cst_70 = arith.constant -1.000000e+09 : f32
    %162 = vector.broadcast %cst_70 : f32 to vector<2x8x8xf32>
    %163 = arith.select %30, %162, %161 : vector<2x8x8xi1>, vector<2x8x8xf32>
    %cst_71 = arith.constant dense<0xFF800000> : vector<2x8xf32>
    %164 = vector.multi_reduction <maximumf>, %163, %cst_71 [2] : vector<2x8x8xf32> to vector<2x8xf32>
    %165 = vector.shape_cast %164 : vector<2x8xf32> to vector<2x8x1xf32>
    %166 = vector.broadcast %165 : vector<2x8x1xf32> to vector<2x8x8xf32>
    %167 = arith.subf %163, %166 : vector<2x8x8xf32>
    %168 = math.exp %167 : vector<2x8x8xf32>
    %cst_72 = arith.constant dense<0.000000e+00> : vector<2x8xf32>
    %169 = vector.multi_reduction <add>, %168, %cst_72 [2] : vector<2x8x8xf32> to vector<2x8xf32>
    %170 = vector.shape_cast %169 : vector<2x8xf32> to vector<2x8x1xf32>
    %171 = vector.broadcast %170 : vector<2x8x1xf32> to vector<2x8x8xf32>
    %172 = arith.divf %168, %171 : vector<2x8x8xf32>
    %173 = vector.shape_cast %172 : vector<2x8x8xf32> to vector<2x1x8x8xf32>
    %174 = arith.truncf %173 : vector<2x1x8x8xf32> to vector<2x1x8x8xbf16>
    %c0_73 = arith.constant 0 : index
    %c3_74 = arith.constant 3 : index
    %c0_75 = arith.constant 0 : index
    %c0_76 = arith.constant 0 : index
    %175 = vector.load %arg15[%c0_73, %c3_74, %c0_75, %c0_76] : memref<2x4x8x8xbf16, #tpu.memory_space<vmem>>, vector<2x1x8x8xbf16>
    tpu.vector_store %arg15[%c0_73, %c3_74, %c0_75, %c0_76], %174 {strides = array<i32>} : memref<2x4x8x8xbf16, #tpu.memory_space<vmem>>, vector<2x1x8x8xbf16>,
    %176 = arith.truncf %172 : vector<2x8x8xf32> to vector<2x8x8xbf16>
    "tpu.trace_start"() <{level = 10 : i32, message = "bqk,bkd->bqd"}> : () -> ()
    %cst_77 = arith.constant dense<0.000000e+00> : vector<2x8x8xf32>
    %177 = tpu.matmul %176, %154, %cst_77 {dimension_numbers = #tpu.dot_dimension_numbers<[2], [1], [1], [2], [0, 0, 0, 1, 1, 2], [0], [0]>} : vector<2x8x8xbf16>, vector<2x8x8xbf16>, vector<2x8x8xf32> -> vector<2x8x8xf32>
    "tpu.trace_stop"() : () -> ()
    %178 = vector.shape_cast %177 : vector<2x8x8xf32> to vector<16x8xf32>
    %179 = arith.truncf %178 : vector<16x8xf32> to vector<16x8xbf16>
    %c24 = arith.constant 24 : index
    %c0_78 = arith.constant 0 : index
    %180 = vector.load %arg12[%c24, %c0_78] : memref<32x32xf32, #tpu.memory_space<vmem>>, vector<8x32xf32>
    %181 = arith.truncf %180 : vector<8x32xf32> to vector<8x32xbf16>
    %cst_79 = arith.constant dense<0.000000e+00> : vector<16x32xf32>
    %182 = tpu.matmul %179, %181, %cst_79 {dimension_numbers = #tpu.dot_dimension_numbers<[1], [0], [0], [1], [0, 0, 1, 1], [], []>} : vector<16x8xbf16>, vector<8x32xbf16>, vector<16x32xf32> -> vector<16x32xf32>
    %183 = arith.addf %145, %182 : vector<16x32xf32>
    %c0_80 = arith.constant 0 : index
    %c0_81 = arith.constant 0 : index
    %184 = vector.load %arg13[%c0_80, %c0_81] : memref<1x32xf32, #tpu.memory_space<vmem>>, vector<1x32xf32>
    %185 = vector.broadcast %184 : vector<1x32xf32> to vector<16x32xf32>
    %186 = arith.addf %183, %185 : vector<16x32xf32>
    %187 = vector.shape_cast %186 : vector<16x32xf32> to vector<2x8x32xf32>
    %c0_82 = arith.constant 0 : index
    %c0_83 = arith.constant 0 : index
    %c0_84 = arith.constant 0 : index
    %188 = vector.load %arg14[%c0_82, %c0_83, %c0_84] : memref<2x8x32xf32, #tpu.memory_space<vmem>>, vector<2x8x32xf32>
    tpu.vector_store %arg14[%c0_82, %c0_83, %c0_84], %187 {strides = array<i32>} : memref<2x8x32xf32, #tpu.memory_space<vmem>>, vector<2x8x32xf32>,
    return
  }
  func.func @transform_0(%arg0: i32) -> (i32, i32, i32) {
    %c0_i32 = arith.constant 0 : i32
    %c0_i32_0 = arith.constant 0 : i32
    %c0_i32_1 = arith.constant 0 : i32
    return %arg0, %c0_i32, %c0_i32_0 : i32, i32, i32
  }
  func.func @transform_1(%arg0: i32) -> (i32, i32, i32) {
    %c0_i32 = arith.constant 0 : i32
    %c0_i32_0 = arith.constant 0 : i32
    %c0_i32_1 = arith.constant 0 : i32
    return %arg0, %c0_i32, %c0_i32_0 : i32, i32, i32
  }
  func.func @transform_2(%arg0: i32) -> (i32, i32, i32) {
    %c0_i32 = arith.constant 0 : i32
    %c0_i32_0 = arith.constant 0 : i32
    %c0_i32_1 = arith.constant 0 : i32
    return %arg0, %c0_i32, %c0_i32_0 : i32, i32, i32
  }
  func.func @transform_3(%arg0: i32) -> (i32, i32, i32) {
    %c0_i32 = arith.constant 0 : i32
    %c0_i32_0 = arith.constant 0 : i32
    %c0_i32_1 = arith.constant 0 : i32
    return %arg0, %c0_i32, %c0_i32_0 : i32, i32, i32
  }
  func.func @transform_4(%arg0: i32) -> (i32, i32, i32) {
    %c0_i32 = arith.constant 0 : i32
    %c0_i32_0 = arith.constant 0 : i32
    %c0_i32_1 = arith.constant 0 : i32
    %c0_i32_2 = arith.constant 0 : i32
    return %c0_i32, %c0_i32_0, %c0_i32_1 : i32, i32, i32
  }
  func.func @transform_5(%arg0: i32) -> (i32, i32) {
    %c0_i32 = arith.constant 0 : i32
    %c0_i32_0 = arith.constant 0 : i32
    %c0_i32_1 = arith.constant 0 : i32
    return %c0_i32, %c0_i32_0 : i32, i32
  }
  func.func @transform_6(%arg0: i32) -> (i32, i32) {
    %c0_i32 = arith.constant 0 : i32
    %c0_i32_0 = arith.constant 0 : i32
    %c0_i32_1 = arith.constant 0 : i32
    return %c0_i32, %c0_i32_0 : i32, i32
  }
  func.func @transform_7(%arg0: i32) -> (i32, i32) {
    %c0_i32 = arith.constant 0 : i32
    %c0_i32_0 = arith.constant 0 : i32
    %c0_i32_1 = arith.constant 0 : i32
    return %c0_i32, %c0_i32_0 : i32, i32
  }
  func.func @transform_8(%arg0: i32) -> (i32, i32) {
    %c0_i32 = arith.constant 0 : i32
    %c0_i32_0 = arith.constant 0 : i32
    %c0_i32_1 = arith.constant 0 : i32
    return %c0_i32, %c0_i32_0 : i32, i32
  }
  func.func @transform_9(%arg0: i32) -> (i32, i32) {
    %c0_i32 = arith.constant 0 : i32
    %c0_i32_0 = arith.constant 0 : i32
    %c0_i32_1 = arith.constant 0 : i32
    return %c0_i32, %c0_i32_0 : i32, i32
  }
  func.func @transform_10(%arg0: i32) -> (i32, i32) {
    %c0_i32 = arith.constant 0 : i32
    %c0_i32_0 = arith.constant 0 : i32
    %c0_i32_1 = arith.constant 0 : i32
    return %c0_i32, %c0_i32_0 : i32, i32
  }
  func.func @transform_11(%arg0: i32) -> (i32, i32) {
    %c0_i32 = arith.constant 0 : i32
    %c0_i32_0 = arith.constant 0 : i32
    %c0_i32_1 = arith.constant 0 : i32
    return %c0_i32, %c0_i32_0 : i32, i32
  }
  func.func @transform_12(%arg0: i32) -> (i32, i32) {
    %c0_i32 = arith.constant 0 : i32
    %c0_i32_0 = arith.constant 0 : i32
    %c0_i32_1 = arith.constant 0 : i32
    return %c0_i32, %c0_i32_0 : i32, i32
  }
  func.func @transform_13(%arg0: i32) -> (i32, i32, i32) {
    %c0_i32 = arith.constant 0 : i32
    %c0_i32_0 = arith.constant 0 : i32
    %c0_i32_1 = arith.constant 0 : i32
    return %arg0, %c0_i32, %c0_i32_0 : i32, i32, i32
  }
  func.func @transform_14(%arg0: i32) -> (i32, i32, i32, i32) {
    %c0_i32 = arith.constant 0 : i32
    %c0_i32_0 = arith.constant 0 : i32
    %c0_i32_1 = arith.constant 0 : i32
    %c0_i32_2 = arith.constant 0 : i32
    return %arg0, %c0_i32, %c0_i32_0, %c0_i32_1 : i32, i32, i32, i32
  }
}

</mosaic_0001>

<llo_original>
// kernel: tpu_custom_call.1
$region0: #{tpu_custom_call.1}
  #allocation0 [shape = 'u32[]', space=smem, size = 0x4, offset = 0x4, fixed_abs, tag = 'smem constant byte address 0x4 - core index']
  #allocation1 [shape = 'u32[144,128]{1,0:T(1,128)}', space=vmem, size = 0x12000, scoped, tag = 'internal scratch']
  %s0 = inlined_call_operand.hbm [shape: f32[4,8,32], index: 0, kind: input, shape index: {}]
  %s1 = inlined_call_operand.hbm [shape: f32[4,8,32], index: 1, kind: input, shape index: {}]
  %s2 = inlined_call_operand.hbm [shape: f32[4,8,32], index: 2, kind: input, shape index: {}]
  %s3 = inlined_call_operand.hbm [shape: s8[4,8,8], index: 3, kind: input, shape index: {}]
  %s4 = inlined_call_operand.hbm [shape: bf16[4,8,8], index: 4, kind: input, shape index: {}]
  %s5 = inlined_call_operand.hbm [shape: f32[32,32], index: 5, kind: input, shape index: {}]
  %s6 = inlined_call_operand.hbm [shape: f32[1,32], index: 6, kind: input, shape index: {}]
  %s7 = inlined_call_operand.hbm [shape: f32[32,32], index: 7, kind: input, shape index: {}]
  %s8 = inlined_call_operand.hbm [shape: f32[1,32], index: 8, kind: input, shape index: {}]
  %s9 = inlined_call_operand.hbm [shape: f32[32,32], index: 9, kind: input, shape index: {}]
  %s10 = inlined_call_operand.hbm [shape: f32[1,32], index: 10, kind: input, shape index: {}]
  %s11 = inlined_call_operand.hbm [shape: f32[32,32], index: 11, kind: input, shape index: {}]
  %s12 = inlined_call_operand.hbm [shape: f32[1,32], index: 12, kind: input, shape index: {}]
  %s13 = inlined_call_operand.hbm [shape: f32[4,8,32], index: 13, kind: output, shape index: {0}]
  %s14 = inlined_call_operand.hbm [shape: bf16[4,4,8,8], index: 14, kind: output, shape index: {1}]
  %15 = xla_tuple %s13, %s14
  %s16 = sld [smem:[#allocation0]]
  $region145: #{tpu_custom_call.1} parent=0
    _
  %s18 = ssub.s32 1, %s16
  %s19 = scalar_select 0, %s18, %s16
  $region1: #{tpu_custom_call.1} parent=0
    #allocation2 [shape = 'u8[16384]{0}', space=vmem, size = 0x4000, scoped, tag = 'input window, operand 0']
    #allocation3 [shape = 's32[2]{0}', space=sflag, size = 0x8, scoped, tag = 'scoped memory for tpu_custom_call.1']
    #allocation4 [shape = 's32[2]{0}', space=sflag, size = 0x8, scoped, tag = 'scoped memory for tpu_custom_call.1']
    #allocation5 [shape = 'u8[16384]{0}', space=vmem, size = 0x4000, scoped, tag = 'input window, operand 1']
    #allocation6 [shape = 's32[2]{0}', space=sflag, size = 0x8, scoped, tag = 'scoped memory for tpu_custom_call.1']
    #allocation7 [shape = 'u8[16384]{0}', space=vmem, size = 0x4000, scoped, tag = 'input window, operand 2']
    #allocation8 [shape = 'u8[4096]{0}', space=vmem, size = 0x1000, scoped, tag = 'input window, operand 3']
    #allocation9 [shape = 's32[2]{0}', space=sflag, size = 0x8, scoped, tag = 'scoped memory for tpu_custom_call.1']
    #allocation10 [shape = 'u8[8192]{0}', space=vmem, size = 0x2000, scoped, tag = 'input window, operand 4, single buffered']
    #allocation11 [shape = 'u8[16384]{0}', space=vmem, size = 0x4000, scoped, tag = 'input window, operand 5, single buffered']
    #allocation12 [shape = 's32[1]{0}', space=sflag, size = 0x4, scoped, tag = 'scoped memory for tpu_custom_call.1']
    #allocation13 [shape = 'u8[512]{0}', space=vmem, size = 0x400, scoped, tag = 'input window, operand 6, single buffered']
    #allocation14 [shape = 'u8[16384]{0}', space=vmem, size = 0x4000, scoped, tag = 'input window, operand 7, single buffered']
    #allocation15 [shape = 's32[1]{0}', space=sflag, size = 0x4, scoped, tag = 'scoped memory for tpu_custom_call.1']
    #allocation16 [shape = 'u8[512]{0}', space=vmem, size = 0x400, scoped, tag = 'input window, operand 8, single buffered']
    #allocation17 [shape = 'u8[16384]{0}', space=vmem, size = 0x4000, scoped, tag = 'input window, operand 9, single buffered']
    #allocation18 [shape = 's32[1]{0}', space=sflag, size = 0x4, scoped, tag = 'scoped memory for tpu_custom_call.1']
    #allocation19 [shape = 'u8[512]{0}', space=vmem, size = 0x400, scoped, tag = 'input window, operand 10, single buffered']
    #allocation20 [shape = 'u8[16384]{0}', space=vmem, size = 0x4000, scoped, tag = 'input window, operand 11, single buffered']
    #allocation21 [shape = 's32[1]{0}', space=sflag, size = 0x4, scoped, tag = 'scoped memory for tpu_custom_call.1']
    #allocation22 [shape = 'u8[512]{0}', space=vmem, size = 0x400, scoped, tag = 'input window, operand 12, single buffered']
    #allocation23 [shape = 'u8[16384]{0}', space=vmem, size = 0x4000, scoped, tag = 'output window, operand 0']
    #allocation24 [shape = 'u8[32768]{0}', space=vmem, size = 0x8000, scoped, tag = 'output window, operand 1']
    #allocation25 [shape = 's32[2]{0}', space=sflag, size = 0x8, scoped, tag = 'scoped memory for tpu_custom_call.1']
    %20 = vsyncpa [#allocation3], 0
    %s21 = scalar_lea.sflag [#allocation3], 1
    %22 = vsyncpa %s21, 0
    %23 = vsyncpa [#allocation6], 0
    %s24 = scalar_lea.sflag [#allocation6], 1
    %25 = vsyncpa %s24, 0
    %26 = vsyncpa [#allocation9], 0
    %s27 = scalar_lea.sflag [#allocation9], 1
    %28 = vsyncpa %s27, 0
    %29 = vsyncpa [#allocation12], 0
    %30 = vsyncpa [#allocation15], 0
    %31 = vsyncpa [#allocation18], 0
    %32 = vsyncpa [#allocation21], 0
    %33 = vsyncpa [#allocation4], 0
    %s34 = scalar_lea.sflag [#allocation4], 1
    %35 = vsyncpa %s34, 0
    %36 = vsyncpa [#allocation25], 0
    %s37 = scalar_lea.sflag [#allocation25], 1
    %38 = vsyncpa %s37, 0
    loop: start=0, step=1, limit=4
    $region2: #{tpu_custom_call.1} parent=1 // loop_pre_header
      _
    $region3: #{tpu_custom_call.1} parent=1 // loop_header
      %s40 = sphi 0, %s44
      %p41 = scmp.ge.s32.totalorder %s40, 4
      %s50 = sphi 0, %s52
      %s53 = sphi 0, %s50
      %s54 = sphi 0, %s53
      %s70 = sphi 0, %s54
      %s76 = sphi 0, %s78
      %s79 = sphi 0, %s76
      %s80 = sphi 0, %s79
      %s96 = sphi 0, %s80
      %s102 = sphi 0, %s104
      %s105 = sphi 0, %s102
      %s106 = sphi 0, %s105
      %s122 = sphi 0, %s106
      %s128 = sphi 0, %s130
      %s131 = sphi 0, %s128
      %s132 = sphi 0, %s131
      %s148 = sphi 0, %s132
      %s152 = sphi 0, %s152
      %s154 = sphi 0, %s152
      %s155 = sphi 0, %s154
      %s169 = sphi 0, %s155
      %s173 = sphi 0, %s173
      %s175 = sphi 0, %s173
      %s176 = sphi 0, %s175
      %s190 = sphi 0, %s176
      %s194 = sphi 0, %s194
      %s196 = sphi 0, %s194
      %s197 = sphi 0, %s196
      %s211 = sphi 0, %s197
      %s215 = sphi 0, %s215
      %s217 = sphi 0, %s215
      %s218 = sphi 0, %s217
      %s232 = sphi 0, %s218
      %s236 = sphi 0, %s236
      %s238 = sphi 0, %s236
      %s239 = sphi 0, %s238
      %s253 = sphi 0, %s239
      %s257 = sphi 0, %s257
      %s259 = sphi 0, %s257
      %s260 = sphi 0, %s259
      %s274 = sphi 0, %s260
      %s278 = sphi 0, %s278
      %s280 = sphi 0, %s278
      %s281 = sphi 0, %s280
      %s295 = sphi 0, %s281
      %s299 = sphi 0, %s299
      %s301 = sphi 0, %s299
      %s302 = sphi 0, %s301
      %s316 = sphi 0, %s302
      %s320 = sphi 0, %s320
      %s322 = sphi 0, %s320
      %s323 = sphi 0, %s322
      %s337 = sphi 0, %s323
      %s343 = sphi 0, %s345
      %s346 = sphi 0, %s343
      %s347 = sphi 0, %s346
      %s363 = sphi 0, %s347
      %s369 = sphi 0, %s371
      %s372 = sphi 0, %s369
      %s373 = sphi 0, %s372
      %s389 = sphi 0, %s373
    $region4: #{tpu_custom_call.1} parent=1 // loop_header_branch
      %43 = sbr.rel (%p41) target = $region8
    $region5: #{tpu_custom_call.1} parent=1 // loop_body
      %s45 = ssub.s32 %s40, 1
      %s46 = ssub.s32 %s40, 2
      %s47 = sadd.s32 %s40, 1
      %s48 = ssub.s32 %s40, %s47
      %p49 = scmp.eq.s32.totalorder %s48, 0
      %s51 = sadd.s32 %s50, 1
      %s52 = scalar_select %p49, %s50, %s51
      %p55 = pneg %p49
      %p56 = scmp.eq.s32.totalorder %s40, 1
      %p57 = por %p55, %p56
      %p58 = scmp.ne.s32.totalorder %s50, %s53
      %p59 = scmp.eq.s32.totalorder %s40, 0
      %p60 = por %p58, %p59
      %p61 = scmp.ne.s32.totalorder %s50, %s53
      %p62 = scmp.eq.s32.totalorder %s45, 1
      %p63 = por %p61, %p62
      %p64 = scmp.ne.s32.totalorder %s53, %s54
      %p65 = scmp.eq.s32.totalorder %s45, 0
      %p66 = por %p64, %p65
      %p67 = scmp.ne.s32.totalorder %s53, %s54
      %p68 = scmp.eq.s32.totalorder %s46, 1
      %p69 = por %p67, %p68
      %p71 = scmp.ne.s32.totalorder %s54, %s70
      %p72 = scmp.eq.s32.totalorder %s46, 0
      %p73 = por %p71, %p72
      %s74 = ssub.s32 %s40, %s47
      %p75 = scmp.eq.s32.totalorder %s74, 0
      %s77 = sadd.s32 %s76, 1
      %s78 = scalar_select %p75, %s76, %s77
      %p81 = pneg %p75
      %p82 = scmp.eq.s32.totalorder %s40, 1
      %p83 = por %p81, %p82
      %p84 = scmp.ne.s32.totalorder %s76, %s79
      %p85 = scmp.eq.s32.totalorder %s40, 0
      %p86 = por %p84, %p85
      %p87 = scmp.ne.s32.totalorder %s76, %s79
      %p88 = scmp.eq.s32.totalorder %s45, 1
      %p89 = por %p87, %p88
      %p90 = scmp.ne.s32.totalorder %s79, %s80
      %p91 = scmp.eq.s32.totalorder %s45, 0
      %p92 = por %p90, %p91
      %p93 = scmp.ne.s32.totalorder %s79, %s80
      %p94 = scmp.eq.s32.totalorder %s46, 1
      %p95 = por %p93, %p94
      %p97 = scmp.ne.s32.totalorder %s80, %s96
      %p98 = scmp.eq.s32.totalorder %s46, 0
      %p99 = por %p97, %p98
      %s100 = ssub.s32 %s40, %s47
      %p101 = scmp.eq.s32.totalorder %s100, 0
      %s103 = sadd.s32 %s102, 1
      %s104 = scalar_select %p101, %s102, %s103
      %p107 = pneg %p101
      %p108 = scmp.eq.s32.totalorder %s40, 1
      %p109 = por %p107, %p108
      %p110 = scmp.ne.s32.totalorder %s102, %s105
      %p111 = scmp.eq.s32.totalorder %s40, 0
      %p112 = por %p110, %p111
      %p113 = scmp.ne.s32.totalorder %s102, %s105
      %p114 = scmp.eq.s32.totalorder %s45, 1
      %p115 = por %p113, %p114
      %p116 = scmp.ne.s32.totalorder %s105, %s106
      %p117 = scmp.eq.s32.totalorder %s45, 0
      %p118 = por %p116, %p117
      %p119 = scmp.ne.s32.totalorder %s105, %s106
      %p120 = scmp.eq.s32.totalorder %s46, 1
      %p121 = por %p119, %p120
      %p123 = scmp.ne.s32.totalorder %s106, %s122
      %p124 = scmp.eq.s32.totalorder %s46, 0
      %p125 = por %p123, %p124
      %s126 = ssub.s32 %s40, %s47
      %p127 = scmp.eq.s32.totalorder %s126, 0
      %s129 = sadd.s32 %s128, 1
      %s130 = scalar_select %p127, %s128, %s129
      %p133 = pneg %p127
      %p134 = scmp.eq.s32.totalorder %s40, 1
      %p135 = por %p133, %p134
      %p136 = scmp.ne.s32.totalorder %s128, %s131
      %p137 = scmp.eq.s32.totalorder %s40, 0
      %p138 = por %p136, %p137
      %p139 = scmp.ne.s32.totalorder %s128, %s131
      %p140 = scmp.eq.s32.totalorder %s45, 1
      %p141 = por %p139, %p140
      %p142 = scmp.ne.s32.totalorder %s131, %s132
      %p143 = scmp.eq.s32.totalorder %s45, 0
      %p144 = por %p142, %p143
      %p145 = scmp.ne.s32.totalorder %s131, %s132
      %p146 = scmp.eq.s32.totalorder %s46, 1
      %p147 = por %p145, %p146
      %p149 = scmp.ne.s32.totalorder %s132, %s148
      %p150 = scmp.eq.s32.totalorder %s46, 0
      %p151 = por %p149, %p150
      %s153 = sadd.s32 %s152, 1
      %p156 = scmp.eq.s32.totalorder %s40, 1
      %p157 = scmp.ne.s32.totalorder %s152, %s154
      %p158 = scmp.eq.s32.totalorder %s40, 0
      %p159 = por %p157, %p158
      %p160 = scmp.ne.s32.totalorder %s152, %s154
      %p161 = scmp.eq.s32.totalorder %s45, 1
      %p162 = por %p160, %p161
      %p163 = scmp.ne.s32.totalorder %s154, %s155
      %p164 = scmp.eq.s32.totalorder %s45, 0
      %p165 = por %p163, %p164
      %p166 = scmp.ne.s32.totalorder %s154, %s155
      %p167 = scmp.eq.s32.totalorder %s46, 1
      %p168 = por %p166, %p167
      %p170 = scmp.ne.s32.totalorder %s155, %s169
      %p171 = scmp.eq.s32.totalorder %s46, 0
      %p172 = por %p170, %p171
      %s174 = sadd.s32 %s173, 1
      %p177 = scmp.eq.s32.totalorder %s40, 1
      %p178 = scmp.ne.s32.totalorder %s173, %s175
      %p179 = scmp.eq.s32.totalorder %s40, 0
      %p180 = por %p178, %p179
      %p181 = scmp.ne.s32.totalorder %s173, %s175
      %p182 = scmp.eq.s32.totalorder %s45, 1
      %p183 = por %p181, %p182
      %p184 = scmp.ne.s32.totalorder %s175, %s176
      %p185 = scmp.eq.s32.totalorder %s45, 0
      %p186 = por %p184, %p185
      %p187 = scmp.ne.s32.totalorder %s175, %s176
      %p188 = scmp.eq.s32.totalorder %s46, 1
      %p189 = por %p187, %p188
      %p191 = scmp.ne.s32.totalorder %s176, %s190
      %p192 = scmp.eq.s32.totalorder %s46, 0
      %p193 = por %p191, %p192
      %s195 = sadd.s32 %s194, 1
      %p198 = scmp.eq.s32.totalorder %s40, 1
      %p199 = scmp.ne.s32.totalorder %s194, %s196
      %p200 = scmp.eq.s32.totalorder %s40, 0
      %p201 = por %p199, %p200
      %p202 = scmp.ne.s32.totalorder %s194, %s196
      %p203 = scmp.eq.s32.totalorder %s45, 1
      %p204 = por %p202, %p203
      %p205 = scmp.ne.s32.totalorder %s196, %s197
      %p206 = scmp.eq.s32.totalorder %s45, 0
      %p207 = por %p205, %p206
      %p208 = scmp.ne.s32.totalorder %s196, %s197
      %p209 = scmp.eq.s32.totalorder %s46, 1
      %p210 = por %p208, %p209
      %p212 = scmp.ne.s32.totalorder %s197, %s211
      %p213 = scmp.eq.s32.totalorder %s46, 0
      %p214 = por %p212, %p213
      %s216 = sadd.s32 %s215, 1
      %p219 = scmp.eq.s32.totalorder %s40, 1
      %p220 = scmp.ne.s32.totalorder %s215, %s217
      %p221 = scmp.eq.s32.totalorder %s40, 0
      %p222 = por %p220, %p221
      %p223 = scmp.ne.s32.totalorder %s215, %s217
      %p224 = scmp.eq.s32.totalorder %s45, 1
      %p225 = por %p223, %p224
      %p226 = scmp.ne.s32.totalorder %s217, %s218
      %p227 = scmp.eq.s32.totalorder %s45, 0
      %p228 = por %p226, %p227
      %p229 = scmp.ne.s32.totalorder %s217, %s218
      %p230 = scmp.eq.s32.totalorder %s46, 1
      %p231 = por %p229, %p230
      %p233 = scmp.ne.s32.totalorder %s218, %s232
      %p234 = scmp.eq.s32.totalorder %s46, 0
      %p235 = por %p233, %p234
      %s237 = sadd.s32 %s236, 1
      %p240 = scmp.eq.s32.totalorder %s40, 1
      %p241 = scmp.ne.s32.totalorder %s236, %s238
      %p242 = scmp.eq.s32.totalorder %s40, 0
      %p243 = por %p241, %p242
      %p244 = scmp.ne.s32.totalorder %s236, %s238
      %p245 = scmp.eq.s32.totalorder %s45, 1
      %p246 = por %p244, %p245
      %p247 = scmp.ne.s32.totalorder %s238, %s239
      %p248 = scmp.eq.s32.totalorder %s45, 0
      %p249 = por %p247, %p248
      %p250 = scmp.ne.s32.totalorder %s238, %s239
      %p251 = scmp.eq.s32.totalorder %s46, 1
      %p252 = por %p250, %p251
      %p254 = scmp.ne.s32.totalorder %s239, %s253
      %p255 = scmp.eq.s32.totalorder %s46, 0
      %p256 = por %p254, %p255
      %s258 = sadd.s32 %s257, 1
      %p261 = scmp.eq.s32.totalorder %s40, 1
      %p262 = scmp.ne.s32.totalorder %s257, %s259
      %p263 = scmp.eq.s32.totalorder %s40, 0
      %p264 = por %p262, %p263
      %p265 = scmp.ne.s32.totalorder %s257, %s259
      %p266 = scmp.eq.s32.totalorder %s45, 1
      %p267 = por %p265, %p266
      %p268 = scmp.ne.s32.totalorder %s259, %s260
      %p269 = scmp.eq.s32.totalorder %s45, 0
      %p270 = por %p268, %p269
      %p271 = scmp.ne.s32.totalorder %s259, %s260
      %p272 = scmp.eq.s32.totalorder %s46, 1
      %p273 = por %p271, %p272
      %p275 = scmp.ne.s32.totalorder %s260, %s274
      %p276 = scmp.eq.s32.totalorder %s46, 0
      %p277 = por %p275, %p276
      %s279 = sadd.s32 %s278, 1
      %p282 = scmp.eq.s32.totalorder %s40, 1
      %p283 = scmp.ne.s32.totalorder %s278, %s280
      %p284 = scmp.eq.s32.totalorder %s40, 0
      %p285 = por %p283, %p284
      %p286 = scmp.ne.s32.totalorder %s278, %s280
      %p287 = scmp.eq.s32.totalorder %s45, 1
      %p288 = por %p286, %p287
      %p289 = scmp.ne.s32.totalorder %s280, %s281
      %p290 = scmp.eq.s32.totalorder %s45, 0
      %p291 = por %p289, %p290
      %p292 = scmp.ne.s32.totalorder %s280, %s281
      %p293 = scmp.eq.s32.totalorder %s46, 1
      %p294 = por %p292, %p293
      %p296 = scmp.ne.s32.totalorder %s281, %s295
      %p297 = scmp.eq.s32.totalorder %s46, 0
      %p298 = por %p296, %p297
      %s300 = sadd.s32 %s299, 1
      %p303 = scmp.eq.s32.totalorder %s40, 1
      %p304 = scmp.ne.s32.totalorder %s299, %s301
      %p305 = scmp.eq.s32.totalorder %s40, 0
      %p306 = por %p304, %p305
      %p307 = scmp.ne.s32.totalorder %s299, %s301
      %p308 = scmp.eq.s32.totalorder %s45, 1
      %p309 = por %p307, %p308
      %p310 = scmp.ne.s32.totalorder %s301, %s302
      %p311 = scmp.eq.s32.totalorder %s45, 0
      %p312 = por %p310, %p311
      %p313 = scmp.ne.s32.totalorder %s301, %s302
      %p314 = scmp.eq.s32.totalorder %s46, 1
      %p315 = por %p313, %p314
      %p317 = scmp.ne.s32.totalorder %s302, %s316
      %p318 = scmp.eq.s32.totalorder %s46, 0
      %p319 = por %p317, %p318
      %s321 = sadd.s32 %s320, 1
      %p324 = scmp.eq.s32.totalorder %s40, 1
      %p325 = scmp.ne.s32.totalorder %s320, %s322
      %p326 = scmp.eq.s32.totalorder %s40, 0
      %p327 = por %p325, %p326
      %p328 = scmp.ne.s32.totalorder %s320, %s322
      %p329 = scmp.eq.s32.totalorder %s45, 1
      %p330 = por %p328, %p329
      %p331 = scmp.ne.s32.totalorder %s322, %s323
      %p332 = scmp.eq.s32.totalorder %s45, 0
      %p333 = por %p331, %p332
      %p334 = scmp.ne.s32.totalorder %s322, %s323
      %p335 = scmp.eq.s32.totalorder %s46, 1
      %p336 = por %p334, %p335
      %p338 = scmp.ne.s32.totalorder %s323, %s337
      %p339 = scmp.eq.s32.totalorder %s46, 0
      %p340 = por %p338, %p339
      %s341 = ssub.s32 %s40, %s47
      %p342 = scmp.eq.s32.totalorder %s341, 0
      %s344 = sadd.s32 %s343, 1
      %s345 = scalar_select %p342, %s343, %s344
      %p348 = pneg %p342
      %p349 = scmp.eq.s32.totalorder %s40, 1
      %p350 = por %p348, %p349
      %p351 = scmp.ne.s32.totalorder %s343, %s346
      %p352 = scmp.eq.s32.totalorder %s40, 0
      %p353 = por %p351, %p352
      %p354 = scmp.ne.s32.totalorder %s343, %s346
      %p355 = scmp.eq.s32.totalorder %s45, 1
      %p356 = por %p354, %p355
      %p357 = scmp.ne.s32.totalorder %s346, %s347
      %p358 = scmp.eq.s32.totalorder %s45, 0
      %p359 = por %p357, %p358
      %p360 = scmp.ne.s32.totalorder %s346, %s347
      %p361 = scmp.eq.s32.totalorder %s46, 1
      %p362 = por %p360, %p361
      %p364 = scmp.ne.s32.totalorder %s347, %s363
      %p365 = scmp.eq.s32.totalorder %s46, 0
      %p366 = por %p364, %p365
      %s367 = ssub.s32 %s40, %s47
      %p368 = scmp.eq.s32.totalorder %s367, 0
      %s370 = sadd.s32 %s369, 1
      %s371 = scalar_select %p368, %s369, %s370
      %p374 = pneg %p368
      %p375 = scmp.eq.s32.totalorder %s40, 1
      %p376 = por %p374, %p375
      %p377 = scmp.ne.s32.totalorder %s369, %s372
      %p378 = scmp.eq.s32.totalorder %s40, 0
      %p379 = por %p377, %p378
      %p380 = scmp.ne.s32.totalorder %s369, %s372
      %p381 = scmp.eq.s32.totalorder %s45, 1
      %p382 = por %p380, %p381
      %p383 = scmp.ne.s32.totalorder %s372, %s373
      %p384 = scmp.eq.s32.totalorder %s45, 0
      %p385 = por %p383, %p384
      %p386 = scmp.ne.s32.totalorder %s372, %s373
      %p387 = scmp.eq.s32.totalorder %s46, 1
      %p388 = por %p386, %p387
      %p390 = scmp.ne.s32.totalorder %s373, %s389
      %p391 = scmp.eq.s32.totalorder %s46, 0
      %p392 = por %p390, %p391
      %p393 = scmp.le.s32.totalorder 1, %s40
      %p394 = scmp.lt.s32.totalorder %s40, 3
      %p395 = pnand %p393, %p394
      %p396 = pneg %p395
      // Predicated region
      $region9: #{tpu_custom_call.1} parent=5 // pred_check
        _
      $region10: #{tpu_custom_call.1} parent=5 // pred_check_branch
        %398 = sbr.rel (%p395) target = $region12
      $region11: #{tpu_custom_call.1} parent=5 // pred_region
        %s399 = ssub.s32 %s40, 1
        // Predicated region
        $region13: #{tpu_custom_call.1} parent=11 // pred_check
          %p400 = pneg %p165
        $region14: #{tpu_custom_call.1} parent=11 // pred_check_branch
          %402 = sbr.rel (%p400) target = $region16
        $region15: #{tpu_custom_call.1} parent=11 // pred_region
          %s404 = ssub.s32 256, 256
          %405 = vsyncadd [#allocation9], %s404
          %s406 = sshll.u32 [#allocation10], 4
          %s407 = int_to_ptr.vmem [resolvable:$true] %s406
          %412 = dma.hbm_to_vmem [thread:$0]  %s4, 256, %s407, [#allocation9], 64, 64, 4
        $region16: #{tpu_custom_call.1} parent=11 // pred_fallthru
          _
        // Predicated region
        $region17: #{tpu_custom_call.1} parent=11 // pred_check
          %p413 = pneg %p186
        $region18: #{tpu_custom_call.1} parent=11 // pred_check_branch
          %415 = sbr.rel (%p413) target = $region20
        $region19: #{tpu_custom_call.1} parent=11 // pred_region
          %s417 = ssub.s32 512, 512
          %418 = vsyncadd [#allocation12], %s417
          %s419 = sshll.u32 [#allocation11], 4
          %s420 = int_to_ptr.vmem [resolvable:$true] %s419
          %425 = dma.hbm_to_vmem [thread:$0]  %s5, 512, %s420, [#allocation12], 128, 128, 8
        $region20: #{tpu_custom_call.1} parent=11 // pred_fallthru
          _
        // Predicated region
        $region21: #{tpu_custom_call.1} parent=11 // pred_check
          %p426 = pneg %p207
        $region22: #{tpu_custom_call.1} parent=11 // pred_check_branch
          %428 = sbr.rel (%p426) target = $region24
        $region23: #{tpu_custom_call.1} parent=11 // pred_region
          %s430 = ssub.s32 16, 16
          %431 = vsyncadd [#allocation12], %s430
          %s433 = sshll.u32 [#allocation13], 4
          %s434 = int_to_ptr.vmem [resolvable:$true] %s433
          %436 = dma.hbm_to_vmem [thread:$0]  %s6, 16, %s434, [#allocation12]
        $region24: #{tpu_custom_call.1} parent=11 // pred_fallthru
          _
        // Predicated region
        $region25: #{tpu_custom_call.1} parent=11 // pred_check
          %p437 = pneg %p228
        $region26: #{tpu_custom_call.1} parent=11 // pred_check_branch
          %439 = sbr.rel (%p437) target = $region28
        $region27: #{tpu_custom_call.1} parent=11 // pred_region
          %s441 = ssub.s32 512, 512
          %442 = vsyncadd [#allocation15], %s441
          %s443 = sshll.u32 [#allocation14], 4
          %s444 = int_to_ptr.vmem [resolvable:$true] %s443
          %449 = dma.hbm_to_vmem [thread:$0]  %s7, 512, %s444, [#allocation15], 128, 128, 8
        $region28: #{tpu_custom_call.1} parent=11 // pred_fallthru
          _
        // Predicated region
        $region29: #{tpu_custom_call.1} parent=11 // pred_check
          %p450 = pneg %p249
        $region30: #{tpu_custom_call.1} parent=11 // pred_check_branch
          %452 = sbr.rel (%p450) target = $region32
        $region31: #{tpu_custom_call.1} parent=11 // pred_region
          %s454 = ssub.s32 16, 16
          %455 = vsyncadd [#allocation15], %s454
          %s457 = sshll.u32 [#allocation16], 4
          %s458 = int_to_ptr.vmem [resolvable:$true] %s457
          %460 = dma.hbm_to_vmem [thread:$0]  %s8, 16, %s458, [#allocation15]
        $region32: #{tpu_custom_call.1} parent=11 // pred_fallthru
          _
        // Predicated region
        $region33: #{tpu_custom_call.1} parent=11 // pred_check
          %p461 = pneg %p270
        $region34: #{tpu_custom_call.1} parent=11 // pred_check_branch
          %463 = sbr.rel (%p461) target = $region36
        $region35: #{tpu_custom_call.1} parent=11 // pred_region
          %s465 = ssub.s32 512, 512
          %466 = vsyncadd [#allocation18], %s465
          %s467 = sshll.u32 [#allocation17], 4
          %s468 = int_to_ptr.vmem [resolvable:$true] %s467
          %473 = dma.hbm_to_vmem [thread:$0]  %s9, 512, %s468, [#allocation18], 128, 128, 8
        $region36: #{tpu_custom_call.1} parent=11 // pred_fallthru
          _
        // Predicated region
        $region37: #{tpu_custom_call.1} parent=11 // pred_check
          %p474 = pneg %p291
        $region38: #{tpu_custom_call.1} parent=11 // pred_check_branch
          %476 = sbr.rel (%p474) target = $region40
        $region39: #{tpu_custom_call.1} parent=11 // pred_region
          %s478 = ssub.s32 16, 16
          %479 = vsyncadd [#allocation18], %s478
          %s481 = sshll.u32 [#allocation19], 4
          %s482 = int_to_ptr.vmem [resolvable:$true] %s481
          %484 = dma.hbm_to_vmem [thread:$0]  %s10, 16, %s482, [#allocation18]
        $region40: #{tpu_custom_call.1} parent=11 // pred_fallthru
          _
        // Predicated region
        $region41: #{tpu_custom_call.1} parent=11 // pred_check
          %p485 = pneg %p312
        $region42: #{tpu_custom_call.1} parent=11 // pred_check_branch
          %487 = sbr.rel (%p485) target = $region44
        $region43: #{tpu_custom_call.1} parent=11 // pred_region
          %s489 = ssub.s32 512, 512
          %490 = vsyncadd [#allocation21], %s489
          %s491 = sshll.u32 [#allocation20], 4
          %s492 = int_to_ptr.vmem [resolvable:$true] %s491
          %497 = dma.hbm_to_vmem [thread:$0]  %s11, 512, %s492, [#allocation21], 128, 128, 8
        $region44: #{tpu_custom_call.1} parent=11 // pred_fallthru
          _
        // Predicated region
        $region45: #{tpu_custom_call.1} parent=11 // pred_check
          %p498 = pneg %p333
        $region46: #{tpu_custom_call.1} parent=11 // pred_check_branch
          %500 = sbr.rel (%p498) target = $region48
        $region47: #{tpu_custom_call.1} parent=11 // pred_region
          %s502 = ssub.s32 16, 16
          %503 = vsyncadd [#allocation21], %s502
          %s505 = sshll.u32 [#allocation22], 4
          %s506 = int_to_ptr.vmem [resolvable:$true] %s505
          %508 = dma.hbm_to_vmem [thread:$0]  %s12, 16, %s506, [#allocation21]
        $region48: #{tpu_custom_call.1} parent=11 // pred_fallthru
          _
      $region12: #{tpu_custom_call.1} parent=5 // pred_fallthru
        _
      %p509 = scmp.lt.s32.totalorder %s40, 2
      // Predicated region
      $region49: #{tpu_custom_call.1} parent=5 // pred_check
        %p510 = pneg %p509
      $region50: #{tpu_custom_call.1} parent=5 // pred_check_branch
        %512 = sbr.rel (%p510) target = $region52
      $region51: #{tpu_custom_call.1} parent=5 // pred_region
        // Predicated region
        $region53: #{tpu_custom_call.1} parent=51 // pred_check
          %p513 = pneg %p60
        $region54: #{tpu_custom_call.1} parent=51 // pred_check_branch
          %515 = sbr.rel (%p513) target = $region56
        $region55: #{tpu_custom_call.1} parent=51 // pred_region
          %s516 = sand.u32 %s50, 1
          %s517 = scalar_lea.sflag [#allocation3], %s516
          %s518 = sand.u32 %s50, 1
          %s519 = smul.addr %s518, 16
          %s520 = scalar_lea.vmem [#allocation2], %s519
          %s521 = smul.u32 2, %s40
          %s523 = ssub.s32 256, 256
          %524 = vsyncadd %s517, %s523
          %s525 = smul.addr %s521, 128
          %s526 = scalar_lea.hbm %s0, %s525
          %s527 = sshll.u32 %s520, 4
          %s528 = int_to_ptr.vmem [resolvable:$true] %s527
          %533 = dma.hbm_to_vmem [thread:$0]  %s526, 256, %s528, %s517, 128, 128, 8
        $region56: #{tpu_custom_call.1} parent=51 // pred_fallthru
          _
        // Predicated region
        $region57: #{tpu_custom_call.1} parent=51 // pred_check
          %p534 = pneg %p86
        $region58: #{tpu_custom_call.1} parent=51 // pred_check_branch
          %536 = sbr.rel (%p534) target = $region60
        $region59: #{tpu_custom_call.1} parent=51 // pred_region
          %s537 = sand.u32 %s40, 1
          %s538 = scalar_lea.sflag [#allocation6], %s537
          %s539 = sand.u32 %s76, 1
          %s540 = smul.addr %s539, 16
          %s541 = scalar_lea.vmem [#allocation5], %s540
          %s542 = smul.u32 2, %s40
          %s544 = ssub.s32 256, 256
          %545 = vsyncadd %s538, %s544
          %s546 = smul.addr %s542, 128
          %s547 = scalar_lea.hbm %s1, %s546
          %s548 = sshll.u32 %s541, 4
          %s549 = int_to_ptr.vmem [resolvable:$true] %s548
          %554 = dma.hbm_to_vmem [thread:$0]  %s547, 256, %s549, %s538, 128, 128, 8
        $region60: #{tpu_custom_call.1} parent=51 // pred_fallthru
          _
        // Predicated region
        $region61: #{tpu_custom_call.1} parent=51 // pred_check
          %p555 = pneg %p112
        $region62: #{tpu_custom_call.1} parent=51 // pred_check_branch
          %557 = sbr.rel (%p555) target = $region64
        $region63: #{tpu_custom_call.1} parent=51 // pred_region
          %s558 = sand.u32 %s40, 1
          %s559 = scalar_lea.sflag [#allocation6], %s558
          %s560 = sand.u32 %s102, 1
          %s561 = smul.addr %s560, 16
          %s562 = scalar_lea.vmem [#allocation7], %s561
          %s563 = smul.u32 2, %s40
          %s565 = ssub.s32 256, 256
          %566 = vsyncadd %s559, %s565
          %s567 = smul.addr %s563, 128
          %s568 = scalar_lea.hbm %s2, %s567
          %s569 = sshll.u32 %s562, 4
          %s570 = int_to_ptr.vmem [resolvable:$true] %s569
          %575 = dma.hbm_to_vmem [thread:$0]  %s568, 256, %s570, %s559, 128, 128, 8
        $region64: #{tpu_custom_call.1} parent=51 // pred_fallthru
          _
        // Predicated region
        $region65: #{tpu_custom_call.1} parent=51 // pred_check
          %p576 = pneg %p138
        $region66: #{tpu_custom_call.1} parent=51 // pred_check_branch
          %578 = sbr.rel (%p576) target = $region68
        $region67: #{tpu_custom_call.1} parent=51 // pred_region
          %s579 = sand.u32 %s40, 1
          %s580 = scalar_lea.sflag [#allocation9], %s579
          %s581 = sand.u32 %s128, 1
          %s582 = smul.addr %s581, 4
          %s583 = scalar_lea.vmem [#allocation8], %s582
          %s584 = smul.u32 2, %s40
          %s586 = ssub.s32 64, 64
          %587 = vsyncadd %s580, %s586
          %s588 = smul.addr %s584, 32
          %s589 = scalar_lea.hbm %s3, %s588
          %s590 = sshll.u32 %s583, 4
          %s591 = int_to_ptr.vmem [resolvable:$true] %s590
          %596 = dma.hbm_to_vmem [thread:$0]  %s589, 64, %s591, %s580, 32, 32, 2
        $region68: #{tpu_custom_call.1} parent=51 // pred_fallthru
          _
      $region52: #{tpu_custom_call.1} parent=5 // pred_fallthru
        _
      %p597 = scmp.le.s32.totalorder 1, %s40
      %p598 = scmp.lt.s32.totalorder %s40, 3
      %p599 = pnand %p597, %p598
      %p600 = pneg %p599
      // Predicated region
      $region69: #{tpu_custom_call.1} parent=5 // pred_check
        _
      $region70: #{tpu_custom_call.1} parent=5 // pred_check_branch
        %602 = sbr.rel (%p599) target = $region72
      $region71: #{tpu_custom_call.1} parent=5 // pred_region
        %s603 = ssub.s32 %s40, 1
        %s604 = sand.u32 %s53, 1
        %s605 = scalar_lea.sflag [#allocation3], %s604
        %s606 = sand.u32 %s53, 1
        %s607 = smul.addr %s606, 16
        %s608 = scalar_lea.vmem [#allocation2], %s607
        // Predicated region
        $region73: #{tpu_custom_call.1} parent=71 // pred_check
          %p609 = pneg %p66
        $region74: #{tpu_custom_call.1} parent=71 // pred_check_branch
          %611 = sbr.rel (%p609) target = $region76
        $region75: #{tpu_custom_call.1} parent=71 // pred_region
          %612 = dma.done %s605, 256
        $region76: #{tpu_custom_call.1} parent=71 // pred_fallthru
          _
        %s613 = sand.u32 %s45, 1
        %s614 = scalar_lea.sflag [#allocation6], %s613
        %s615 = sand.u32 %s79, 1
        %s616 = smul.addr %s615, 16
        %s617 = scalar_lea.vmem [#allocation5], %s616
        // Predicated region
        $region77: #{tpu_custom_call.1} parent=71 // pred_check
          %p618 = pneg %p92
        $region78: #{tpu_custom_call.1} parent=71 // pred_check_branch
          %620 = sbr.rel (%p618) target = $region80
        $region79: #{tpu_custom_call.1} parent=71 // pred_region
          %621 = dma.done %s614, 256
        $region80: #{tpu_custom_call.1} parent=71 // pred_fallthru
          _
        %s622 = sand.u32 %s45, 1
        %s623 = scalar_lea.sflag [#allocation6], %s622
        %s624 = sand.u32 %s105, 1
        %s625 = smul.addr %s624, 16
        %s626 = scalar_lea.vmem [#allocation7], %s625
        // Predicated region
        $region81: #{tpu_custom_call.1} parent=71 // pred_check
          %p627 = pneg %p118
        $region82: #{tpu_custom_call.1} parent=71 // pred_check_branch
          %629 = sbr.rel (%p627) target = $region84
        $region83: #{tpu_custom_call.1} parent=71 // pred_region
          %630 = dma.done %s623, 256
        $region84: #{tpu_custom_call.1} parent=71 // pred_fallthru
          _
        %s631 = sand.u32 %s45, 1
        %s632 = scalar_lea.sflag [#allocation9], %s631
        %s633 = sand.u32 %s131, 1
        %s634 = smul.addr %s633, 4
        %s635 = scalar_lea.vmem [#allocation8], %s634
        // Predicated region
        $region85: #{tpu_custom_call.1} parent=71 // pred_check
          %p636 = pneg %p144
        $region86: #{tpu_custom_call.1} parent=71 // pred_check_branch
          %638 = sbr.rel (%p636) target = $region88
        $region87: #{tpu_custom_call.1} parent=71 // pred_region
          %639 = dma.done %s632, 64
        $region88: #{tpu_custom_call.1} parent=71 // pred_fallthru
          _
        // Predicated region
        $region89: #{tpu_custom_call.1} parent=71 // pred_check
          %p640 = pneg %p165
        $region90: #{tpu_custom_call.1} parent=71 // pred_check_branch
          %642 = sbr.rel (%p640) target = $region92
        $region91: #{tpu_custom_call.1} parent=71 // pred_region
          %643 = dma.done [#allocation9], 256
        $region92: #{tpu_custom_call.1} parent=71 // pred_fallthru
          _
        // Predicated region
        $region93: #{tpu_custom_call.1} parent=71 // pred_check
          %p644 = pneg %p186
        $region94: #{tpu_custom_call.1} parent=71 // pred_check_branch
          %646 = sbr.rel (%p644) target = $region96
        $region95: #{tpu_custom_call.1} parent=71 // pred_region
          %647 = dma.done [#allocation12], 512
        $region96: #{tpu_custom_call.1} parent=71 // pred_fallthru
          _
        // Predicated region
        $region97: #{tpu_custom_call.1} parent=71 // pred_check
          %p648 = pneg %p207
        $region98: #{tpu_custom_call.1} parent=71 // pred_check_branch
          %650 = sbr.rel (%p648) target = $region100
        $region99: #{tpu_custom_call.1} parent=71 // pred_region
          %651 = dma.done [#allocation12], 16
        $region100: #{tpu_custom_call.1} parent=71 // pred_fallthru
          _
        // Predicated region
        $region101: #{tpu_custom_call.1} parent=71 // pred_check
          %p652 = pneg %p228
        $region102: #{tpu_custom_call.1} parent=71 // pred_check_branch
          %654 = sbr.rel (%p652) target = $region104
        $region103: #{tpu_custom_call.1} parent=71 // pred_region
          %655 = dma.done [#allocation15], 512
        $region104: #{tpu_custom_call.1} parent=71 // pred_fallthru
          _
        // Predicated region
        $region105: #{tpu_custom_call.1} parent=71 // pred_check
          %p656 = pneg %p249
        $region106: #{tpu_custom_call.1} parent=71 // pred_check_branch
          %658 = sbr.rel (%p656) target = $region108
        $region107: #{tpu_custom_call.1} parent=71 // pred_region
          %659 = dma.done [#allocation15], 16
        $region108: #{tpu_custom_call.1} parent=71 // pred_fallthru
          _
        // Predicated region
        $region109: #{tpu_custom_call.1} parent=71 // pred_check
          %p660 = pneg %p270
        $region110: #{tpu_custom_call.1} parent=71 // pred_check_branch
          %662 = sbr.rel (%p660) target = $region112
        $region111: #{tpu_custom_call.1} parent=71 // pred_region
          %663 = dma.done [#allocation18], 512
        $region112: #{tpu_custom_call.1} parent=71 // pred_fallthru
          _
        // Predicated region
        $region113: #{tpu_custom_call.1} parent=71 // pred_check
          %p664 = pneg %p291
        $region114: #{tpu_custom_call.1} parent=71 // pred_check_branch
          %666 = sbr.rel (%p664) target = $region116
        $region115: #{tpu_custom_call.1} parent=71 // pred_region
          %667 = dma.done [#allocation18], 16
        $region116: #{tpu_custom_call.1} parent=71 // pred_fallthru
          _
        // Predicated region
        $region117: #{tpu_custom_call.1} parent=71 // pred_check
          %p668 = pneg %p312
        $region118: #{tpu_custom_call.1} parent=71 // pred_check_branch
          %670 = sbr.rel (%p668) target = $region120
        $region119: #{tpu_custom_call.1} parent=71 // pred_region
          %671 = dma.done [#allocation21], 512
        $region120: #{tpu_custom_call.1} parent=71 // pred_fallthru
          _
        // Predicated region
        $region121: #{tpu_custom_call.1} parent=71 // pred_check
          %p672 = pneg %p333
        $region122: #{tpu_custom_call.1} parent=71 // pred_check_branch
          %674 = sbr.rel (%p672) target = $region124
        $region123: #{tpu_custom_call.1} parent=71 // pred_region
          %675 = dma.done [#allocation21], 16
        $region124: #{tpu_custom_call.1} parent=71 // pred_fallthru
          _
        %s676 = sand.u32 %s53, 1
        %s677 = scalar_lea.sflag [#allocation3], %s676
        %s678 = sand.u32 %s53, 1
        %s679 = smul.addr %s678, 16
        %s680 = scalar_lea.vmem [#allocation2], %s679
        %p681 = pneg %p66
        %p682 = pneg %p63
        %s683 = sand.u32 %s45, 1
        %s684 = scalar_lea.sflag [#allocation6], %s683
        %s685 = sand.u32 %s79, 1
        %s686 = smul.addr %s685, 16
        %s687 = scalar_lea.vmem [#allocation5], %s686
        %p688 = pneg %p92
        %p689 = pneg %p89
        %s690 = sand.u32 %s45, 1
        %s691 = scalar_lea.sflag [#allocation6], %s690
        %s692 = sand.u32 %s105, 1
        %s693 = smul.addr %s692, 16
        %s694 = scalar_lea.vmem [#allocation7], %s693
        %p695 = pneg %p118
        %p696 = pneg %p115
        %s697 = sand.u32 %s45, 1
        %s698 = scalar_lea.sflag [#allocation9], %s697
        %s699 = sand.u32 %s131, 1
        %s700 = smul.addr %s699, 4
        %s701 = scalar_lea.vmem [#allocation8], %s700
        %p702 = pneg %p144
        %p703 = pneg %p141
        %p704 = pneg %p165
        %p705 = pneg %p162
        %p706 = pneg %p186
        %p707 = pneg %p183
        %p708 = pneg %p207
        %p709 = pneg %p204
        %p710 = pneg %p228
        %p711 = pneg %p225
        %p712 = pneg %p249
        %p713 = pneg %p246
        %p714 = pneg %p270
        %p715 = pneg %p267
        %p716 = pneg %p291
        %p717 = pneg %p288
        %p718 = pneg %p312
        %p719 = pneg %p309
        %p720 = pneg %p333
        %p721 = pneg %p330
        %p722 = pneg %p359
        %p723 = pneg %p356
        %s724 = sand.u32 %s346, 1
        %s725 = scalar_lea.sflag [#allocation4], %s724
        %s726 = sand.u32 %s346, 1
        %s727 = smul.addr %s726, 16
        %s728 = scalar_lea.vmem [#allocation23], %s727
        %p729 = pneg %p385
        %p730 = pneg %p382
        %s731 = sand.u32 %s372, 1
        %s732 = scalar_lea.sflag [#allocation25], %s731
        %s733 = sand.u32 %s372, 1
        %s734 = smul.addr %s733, 32
        %s735 = scalar_lea.vmem [#allocation24], %s734
        %s736 = smul.u32 2, %s45
        %s737 = smul.u32 2, %s45
        %s738 = smul.u32 2, %s45
        %s739 = smul.u32 2, %s45
        %s740 = smul.u32 2, %s45
        %s741 = smul.u32 2, %s45
        %v743 = vld [vmem:[%s608] sm:$0xff]
        %v744 = vld [vmem:[%s608 + $0x8] sm:$0xff]
        %v745 = vpack.c.bf16 %v744, %v743
        %v746 = vld [vmem:[%s617] sm:$0xff]
        %v747 = vld [vmem:[%s617 + $0x8] sm:$0xff]
        %v748 = vpack.c.bf16 %v747, %v746
        %v749 = vld [vmem:[%s626] sm:$0xff]
        %v750 = vld [vmem:[%s626 + $0x8] sm:$0xff]
        %v751 = vpack.c.bf16 %v750, %v749
        %v752 = vld [vmem:[#allocation11] sm:$0xff]
        %v753 = vld [vmem:[#allocation11 + $0x8] sm:$0xff]
        %v754 = vld [vmem:[#allocation11 + $0x10] sm:$0xff]
        %v755 = vld [vmem:[#allocation11 + $0x18] sm:$0xff]
        %v756 = vpack.c.bf16 %v753, %v752
        %v757 = vpack.c.bf16 %v755, %v754
        %v758 = vld [vmem:[#allocation13] sm:$0x1]
        %v760 = vlaneseq
        %v761 = vshrl.u32 %v760, 7
        %v762 = vsub.s32 0, %v761
        %v763 = vrot.slane %v758, %v762
        %vm765 = vcmask 261120
        %v767 = vsel %vm765, %v745, 0
        %769 = vmatprep.subr.bf16.mxu0 0
        %770 = vmatpush1.bf16.msra.mxu0 %v756
        %771 = vmatprep.subr.bf16.mxu0 0
        %772 = vmatpush1.bf16.msra.mxu0 %v757
        %773 = vmatprep.subr.bf16.mxu0 0
        %774 = vmatpush1.bf16.msra.mxu0 0
        %775 = vmatprep.subr.bf16.mxu0 0
        %776 = vmatpush1.bf16.msra.mxu0 0
        %777 = vmatprep.subr.bf16.mxu0 0
        %778 = vmatpush1.bf16.msra.mxu0 0
        %779 = vmatprep.subr.bf16.mxu0 0
        %780 = vmatpush1.bf16.msra.mxu0 0
        %781 = vmatprep.subr.bf16.mxu0 0
        %782 = vmatpush1.bf16.msra.mxu0 0
        %783 = vmatprep.subr.bf16.mxu0 0
        %784 = vmatpush1.bf16.msra.mxu0 0
        %785 = vmatprep.subr.bf16.mxu0 0
        %786 = vmatpush1.bf16.msra.mxu0 0
        %787 = vmatprep.subr.bf16.mxu0 0
        %788 = vmatpush1.bf16.msra.mxu0 0
        %789 = vmatprep.subr.bf16.mxu0 0
        %790 = vmatpush1.bf16.msra.mxu0 0
        %791 = vmatprep.subr.bf16.mxu0 0
        %792 = vmatpush1.bf16.msra.mxu0 0
        %793 = vmatprep.subr.bf16.mxu0 0
        %794 = vmatpush1.bf16.msra.mxu0 0
        %795 = vmatprep.subr.bf16.mxu0 0
        %796 = vmatpush1.bf16.msra.mxu0 0
        %797 = vmatprep.subr.bf16.mxu0 0
        %798 = vmatpush1.bf16.msra.mxu0 0
        %799 = vmatprep.subr.bf16.mxu0 0
        %800 = vmatpush1.bf16.msra.mxu0 0
        %801 = vmatprep.mubr.bf16.mxu0 0
        %802 = vmatmul.mubr.bf16.gmra.mrb[0].mxu0 %v767
        %v803 = vpop.f32.mrb[0].mxu0
        %v804 = vadd.f32 %v763, %v803
        %v805 = vpop.f32.mrb[0].mxu0
        %v806 = vpop.f32.mrb[0].mxu0
        %v807 = vadd.f32 %v763, %v806
        %v808 = vpop.f32.mrb[0].mxu0
        %809 = vdwg.mxu0
        %v810 = vld [vmem:[#allocation14] sm:$0xff]
        %v811 = vld [vmem:[#allocation14 + $0x8] sm:$0xff]
        %v812 = vld [vmem:[#allocation14 + $0x10] sm:$0xff]
        %v813 = vld [vmem:[#allocation14 + $0x18] sm:$0xff]
        %v814 = vpack.c.bf16 %v811, %v810
        %v815 = vpack.c.bf16 %v813, %v812
        %v816 = vld [vmem:[#allocation16] sm:$0x1]
        %v818 = vlaneseq
        %v819 = vshrl.u32 %v818, 7
        %v820 = vsub.s32 0, %v819
        %v821 = vrot.slane %v816, %v820
        %v824 = vsel %vm765, %v748, 0
        %826 = vmatprep.subr.bf16.mxu0 0
        %827 = vmatpush1.bf16.msra.mxu0 %v814
        %828 = vmatprep.subr.bf16.mxu0 0
        %829 = vmatpush1.bf16.msra.mxu0 %v815
        %830 = vmatprep.subr.bf16.mxu0 0
        %831 = vmatpush1.bf16.msra.mxu0 0
        %832 = vmatprep.subr.bf16.mxu0 0
        %833 = vmatpush1.bf16.msra.mxu0 0
        %834 = vmatprep.subr.bf16.mxu0 0
        %835 = vmatpush1.bf16.msra.mxu0 0
        %836 = vmatprep.subr.bf16.mxu0 0
        %837 = vmatpush1.bf16.msra.mxu0 0
        %838 = vmatprep.subr.bf16.mxu0 0
        %839 = vmatpush1.bf16.msra.mxu0 0
        %840 = vmatprep.subr.bf16.mxu0 0
        %841 = vmatpush1.bf16.msra.mxu0 0
        %842 = vmatprep.subr.bf16.mxu0 0
        %843 = vmatpush1.bf16.msra.mxu0 0
        %844 = vmatprep.subr.bf16.mxu0 0
        %845 = vmatpush1.bf16.msra.mxu0 0
        %846 = vmatprep.subr.bf16.mxu0 0
        %847 = vmatpush1.bf16.msra.mxu0 0
        %848 = vmatprep.subr.bf16.mxu0 0
        %849 = vmatpush1.bf16.msra.mxu0 0
        %850 = vmatprep.subr.bf16.mxu0 0
        %851 = vmatpush1.bf16.msra.mxu0 0
        %852 = vmatprep.subr.bf16.mxu0 0
        %853 = vmatpush1.bf16.msra.mxu0 0
        %854 = vmatprep.subr.bf16.mxu0 0
        %855 = vmatpush1.bf16.msra.mxu0 0
        %856 = vmatprep.subr.bf16.mxu0 0
        %857 = vmatpush1.bf16.msra.mxu0 0
        %858 = vmatprep.mubr.bf16.mxu0 0
        %859 = vmatmul.mubr.bf16.gmra.mrb[0].mxu0 %v824
        %v860 = vpop.f32.mrb[0].mxu0
        %v861 = vadd.f32 %v821, %v860
        %v862 = vpop.f32.mrb[0].mxu0
        %v863 = vpop.f32.mrb[0].mxu0
        %v864 = vadd.f32 %v821, %v863
        %v865 = vpop.f32.mrb[0].mxu0
        %866 = vdwg.mxu0
        %v867 = vld [vmem:[#allocation17] sm:$0xff]
        %v868 = vld [vmem:[#allocation17 + $0x8] sm:$0xff]
        %v869 = vld [vmem:[#allocation17 + $0x10] sm:$0xff]
        %v870 = vld [vmem:[#allocation17 + $0x18] sm:$0xff]
        %v871 = vpack.c.bf16 %v868, %v867
        %v872 = vpack.c.bf16 %v870, %v869
        %v873 = vld [vmem:[#allocation19] sm:$0x1]
        %v875 = vlaneseq
        %v876 = vshrl.u32 %v875, 7
        %v877 = vsub.s32 0, %v876
        %v878 = vrot.slane %v873, %v877
        %v881 = vsel %vm765, %v751, 0
        %883 = vmatprep.subr.bf16.mxu0 0
        %884 = vmatpush1.bf16.msra.mxu0 %v871
        %885 = vmatprep.subr.bf16.mxu0 0
        %886 = vmatpush1.bf16.msra.mxu0 %v872
        %887 = vmatprep.subr.bf16.mxu0 0
        %888 = vmatpush1.bf16.msra.mxu0 0
        %889 = vmatprep.subr.bf16.mxu0 0
        %890 = vmatpush1.bf16.msra.mxu0 0
        %891 = vmatprep.subr.bf16.mxu0 0
        %892 = vmatpush1.bf16.msra.mxu0 0
        %893 = vmatprep.subr.bf16.mxu0 0
        %894 = vmatpush1.bf16.msra.mxu0 0
        %895 = vmatprep.subr.bf16.mxu0 0
        %896 = vmatpush1.bf16.msra.mxu0 0
        %897 = vmatprep.subr.bf16.mxu0 0
        %898 = vmatpush1.bf16.msra.mxu0 0
        %899 = vmatprep.subr.bf16.mxu0 0
        %900 = vmatpush1.bf16.msra.mxu0 0
        %901 = vmatprep.subr.bf16.mxu0 0
        %902 = vmatpush1.bf16.msra.mxu0 0
        %903 = vmatprep.subr.bf16.mxu0 0
        %904 = vmatpush1.bf16.msra.mxu0 0
        %905 = vmatprep.subr.bf16.mxu0 0
        %906 = vmatpush1.bf16.msra.mxu0 0
        %907 = vmatprep.subr.bf16.mxu0 0
        %908 = vmatpush1.bf16.msra.mxu0 0
        %909 = vmatprep.subr.bf16.mxu0 0
        %910 = vmatpush1.bf16.msra.mxu0 0
        %911 = vmatprep.subr.bf16.mxu0 0
        %912 = vmatpush1.bf16.msra.mxu0 0
        %913 = vmatprep.subr.bf16.mxu0 0
        %914 = vmatpush1.bf16.msra.mxu0 0
        %915 = vmatprep.mubr.bf16.mxu0 0
        %916 = vmatmul.mubr.bf16.gmra.mrb[0].mxu0 %v881
        %v917 = vpop.f32.mrb[0].mxu0
        %v918 = vadd.f32 %v878, %v917
        %v919 = vpop.f32.mrb[0].mxu0
        %v920 = vpop.f32.mrb[0].mxu0
        %v921 = vadd.f32 %v878, %v920
        %v922 = vpop.f32.mrb[0].mxu0
        %923 = vdwg.mxu0
        %v924 = vld [vmem:[%s635] sm:$0x3]
        %v925 = vld [vmem:[%s635 + $0x2] sm:$0x3]
        %v926 = vunpack.c.0.s8 %v924
        %v927 = vunpack.c.0.s8 %v925
        %vm928 = vcmp.ne.s32.totalorder %v926, 0
        %vm929 = vcmp.ne.s32.totalorder %v927, 0
        %v930 = vpack.c.bf16 %v804, %v804
        %v931 = vpack.c.bf16 %v807, %v807
        %v932 = vpack.c.bf16 %v861, %v861
        %v933 = vpack.c.bf16 %v864, %v864
        %v934 = vpack.c.bf16 %v918, %v918
        %v935 = vpack.c.bf16 %v921, %v921
        %v936 = vld [vmem:[#allocation10] sm:$0xf]
        %v937 = vunpack.c.l.bf16 %v936
        %vm938 = vcmask 64512
        %v940 = vsel %vm938, %v930, 0
        %v943 = vsel %vm938, %v932, 0
        %945 = vmatprep.subr.bf16.mxu0 0
        %946 = vmatpush1.bf16.xpose.msra.mxu0 %v943
        %947 = vmatprep.subr.bf16.mxu0 0
        %948 = vmatpush1.bf16.xpose.msra.mxu0 0
        %949 = vmatprep.subr.bf16.mxu0 0
        %950 = vmatpush1.bf16.xpose.msra.mxu0 0
        %951 = vmatprep.subr.bf16.mxu0 0
        %952 = vmatpush1.bf16.xpose.msra.mxu0 0
        %953 = vmatprep.subr.bf16.mxu0 0
        %954 = vmatpush1.bf16.xpose.msra.mxu0 0
        %955 = vmatprep.subr.bf16.mxu0 0
        %956 = vmatpush1.bf16.xpose.msra.mxu0 0
        %957 = vmatprep.subr.bf16.mxu0 0
        %958 = vmatpush1.bf16.xpose.msra.mxu0 0
        %959 = vmatprep.subr.bf16.mxu0 0
        %960 = vmatpush1.bf16.xpose.msra.mxu0 0
        %961 = vmatprep.subr.bf16.mxu0 0
        %962 = vmatpush1.bf16.xpose.msra.mxu0 0
        %963 = vmatprep.subr.bf16.mxu0 0
        %964 = vmatpush1.bf16.xpose.msra.mxu0 0
        %965 = vmatprep.subr.bf16.mxu0 0
        %966 = vmatpush1.bf16.xpose.msra.mxu0 0
        %967 = vmatprep.subr.bf16.mxu0 0
        %968 = vmatpush1.bf16.xpose.msra.mxu0 0
        %969 = vmatprep.subr.bf16.mxu0 0
        %970 = vmatpush1.bf16.xpose.msra.mxu0 0
        %971 = vmatprep.subr.bf16.mxu0 0
        %972 = vmatpush1.bf16.xpose.msra.mxu0 0
        %973 = vmatprep.subr.bf16.mxu0 0
        %974 = vmatpush1.bf16.xpose.msra.mxu0 0
        %975 = vmatprep.subr.bf16.mxu0 0
        %976 = vmatpush1.bf16.xpose.msra.mxu0 0
        %977 = vmatprep.mubr.bf16.mxu0 0
        %978 = vmatmul.mubr.bf16.gmra.mrb[0].mxu0 %v940
        %v979 = vpop.f32.mrb[0].mxu0
        %v980 = vadd.f32 %v937, %v979
        %v981 = vpop.f32.mrb[0].mxu0
        %v982 = vpop.f32.mrb[0].mxu0
        %v983 = vpop.f32.mrb[0].mxu0
        %984 = vdwg.mxu0
        %v986 = vsel %vm938, %v931, 0
        %v989 = vsel %vm938, %v933, 0
        %991 = vmatprep.subr.bf16.mxu0 0
        %992 = vmatpush1.bf16.xpose.msra.mxu0 %v989
        %993 = vmatprep.subr.bf16.mxu0 0
        %994 = vmatpush1.bf16.xpose.msra.mxu0 0
        %995 = vmatprep.subr.bf16.mxu0 0
        %996 = vmatpush1.bf16.xpose.msra.mxu0 0
        %997 = vmatprep.subr.bf16.mxu0 0
        %998 = vmatpush1.bf16.xpose.msra.mxu0 0
        %999 = vmatprep.subr.bf16.mxu0 0
        %1000 = vmatpush1.bf16.xpose.msra.mxu0 0
        %1001 = vmatprep.subr.bf16.mxu0 0
        %1002 = vmatpush1.bf16.xpose.msra.mxu0 0
        %1003 = vmatprep.subr.bf16.mxu0 0
        %1004 = vmatpush1.bf16.xpose.msra.mxu0 0
        %1005 = vmatprep.subr.bf16.mxu0 0
        %1006 = vmatpush1.bf16.xpose.msra.mxu0 0
        %1007 = vmatprep.subr.bf16.mxu0 0
        %1008 = vmatpush1.bf16.xpose.msra.mxu0 0
        %1009 = vmatprep.subr.bf16.mxu0 0
        %1010 = vmatpush1.bf16.xpose.msra.mxu0 0
        %1011 = vmatprep.subr.bf16.mxu0 0
        %1012 = vmatpush1.bf16.xpose.msra.mxu0 0
        %1013 = vmatprep.subr.bf16.mxu0 0
        %1014 = vmatpush1.bf16.xpose.msra.mxu0 0
        %1015 = vmatprep.subr.bf16.mxu0 0
        %1016 = vmatpush1.bf16.xpose.msra.mxu0 0
        %1017 = vmatprep.subr.bf16.mxu0 0
        %1018 = vmatpush1.bf16.xpose.msra.mxu0 0
        %1019 = vmatprep.subr.bf16.mxu0 0
        %1020 = vmatpush1.bf16.xpose.msra.mxu0 0
        %1021 = vmatprep.subr.bf16.mxu0 0
        %1022 = vmatpush1.bf16.xpose.msra.mxu0 0
        %1023 = vmatprep.mubr.bf16.mxu0 0
        %1024 = vmatmul.mubr.bf16.gmra.mrb[0].mxu0 %v986
        %v1025 = vpop.f32.mrb[0].mxu0
        %v1026 = vadd.f32 %v937, %v1025
        %v1027 = vpop.f32.mrb[0].mxu0
        %v1028 = vpop.f32.mrb[0].mxu0
        %v1029 = vpop.f32.mrb[0].mxu0
        %1030 = vdwg.mxu0
        %v1031 = vsel %vm928, -1e+09, %v980
        %v1032 = vsel %vm929, -1e+09, %v1026
        %v1033 = vsel %vm938, %v1031, -inf
        %1034 = vmax.xlane.f32.xlu0 %v1033
        %v1035 = vpop.xlane.xlu0 %1034
        %v1036 = vsel %vm938, %v1032, -inf
        %1037 = vmax.xlane.f32.xlu0 %v1036
        %v1038 = vpop.xlane.xlu0 %1037
        %v1039 = vsub.f32 %v1031, %v1035
        %v1040 = vsub.f32 %v1032, %v1038
        %v1041 = vmul.f32 %v1039, 1.442695
        %v1042 = vpow.pop %v1041
        %v1043 = vmul.f32 %v1040, 1.442695
        %v1044 = vpow.pop %v1043
        %v1045 = vsel %vm938, %v1042, 0.0
        %1046 = vadd.xlane.f32.xlu0 %v1045
        %v1047 = vpop.xlane.xlu0 %1046
        %v1048 = vsel %vm938, %v1044, 0.0
        %1049 = vadd.xlane.f32.xlu0 %v1048
        %v1050 = vpop.xlane.xlu0 %1049
        %v1051 = vrcp.pop %v1047
        %v1052 = vmul.f32 %v1042, %v1051
        %v1053 = vrcp.pop %v1050
        %v1054 = vmul.f32 %v1044, %v1053
        %v1055 = vpack.c.bf16 %v1052, %v1052
        %v1056 = vpack.c.bf16 %v1054, %v1054
        %vm1057 = vcmask 60416
        %1058 = vst.msk [vmem:[%s735] sm:$0xf] %vm1057, %v1055
        %1059 = vst.msk [vmem:[%s735 + $0x10] sm:$0xf] %vm1057, %v1056
        %v1061 = vsel %vm938, %v1055, 0
        %vm1063 = vcmask 1043456
        %v1065 = vsel %vm1063, %v934, 0
        %1067 = vmatprep.subr.bf16.mxu0 0
        %1068 = vmatpush1.bf16.msra.mxu0 %v1065
        %1069 = vmatprep.subr.bf16.mxu0 0
        %1070 = vmatpush1.bf16.msra.mxu0 0
        %1071 = vmatprep.subr.bf16.mxu0 0
        %1072 = vmatpush1.bf16.msra.mxu0 0
        %1073 = vmatprep.subr.bf16.mxu0 0
        %1074 = vmatpush1.bf16.msra.mxu0 0
        %1075 = vmatprep.subr.bf16.mxu0 0
        %1076 = vmatpush1.bf16.msra.mxu0 0
        %1077 = vmatprep.subr.bf16.mxu0 0
        %1078 = vmatpush1.bf16.msra.mxu0 0
        %1079 = vmatprep.subr.bf16.mxu0 0
        %1080 = vmatpush1.bf16.msra.mxu0 0
        %1081 = vmatprep.subr.bf16.mxu0 0
        %1082 = vmatpush1.bf16.msra.mxu0 0
        %1083 = vmatprep.subr.bf16.mxu0 0
        %1084 = vmatpush1.bf16.msra.mxu0 0
        %1085 = vmatprep.subr.bf16.mxu0 0
        %1086 = vmatpush1.bf16.msra.mxu0 0
        %1087 = vmatprep.subr.bf16.mxu0 0
        %1088 = vmatpush1.bf16.msra.mxu0 0
        %1089 = vmatprep.subr.bf16.mxu0 0
        %1090 = vmatpush1.bf16.msra.mxu0 0
        %1091 = vmatprep.subr.bf16.mxu0 0
        %1092 = vmatpush1.bf16.msra.mxu0 0
        %1093 = vmatprep.subr.bf16.mxu0 0
        %1094 = vmatpush1.bf16.msra.mxu0 0
        %1095 = vmatprep.subr.bf16.mxu0 0
        %1096 = vmatpush1.bf16.msra.mxu0 0
        %1097 = vmatprep.subr.bf16.mxu0 0
        %1098 = vmatpush1.bf16.msra.mxu0 0
        %1099 = vmatprep.mubr.bf16.mxu0 0
        %1100 = vmatmul.mubr.bf16.gmra.mrb[0].mxu0 %v1061
        %v1101 = vpop.f32.mrb[0].mxu0
        %v1102 = vadd.f32 0.0, %v1101
        %v1103 = vpop.f32.mrb[0].mxu0
        %v1104 = vpop.f32.mrb[0].mxu0
        %v1105 = vpop.f32.mrb[0].mxu0
        %1106 = vdwg.mxu0
        %v1108 = vsel %vm938, %v1056, 0
        %v1111 = vsel %vm1063, %v935, 0
        %1113 = vmatprep.subr.bf16.mxu0 0
        %1114 = vmatpush1.bf16.msra.mxu0 %v1111
        %1115 = vmatprep.subr.bf16.mxu0 0
        %1116 = vmatpush1.bf16.msra.mxu0 0
        %1117 = vmatprep.subr.bf16.mxu0 0
        %1118 = vmatpush1.bf16.msra.mxu0 0
        %1119 = vmatprep.subr.bf16.mxu0 0
        %1120 = vmatpush1.bf16.msra.mxu0 0
        %1121 = vmatprep.subr.bf16.mxu0 0
        %1122 = vmatpush1.bf16.msra.mxu0 0
        %1123 = vmatprep.subr.bf16.mxu0 0
        %1124 = vmatpush1.bf16.msra.mxu0 0
        %1125 = vmatprep.subr.bf16.mxu0 0
        %1126 = vmatpush1.bf16.msra.mxu0 0
        %1127 = vmatprep.subr.bf16.mxu0 0
        %1128 = vmatpush1.bf16.msra.mxu0 0
        %1129 = vmatprep.subr.bf16.mxu0 0
        %1130 = vmatpush1.bf16.msra.mxu0 0
        %1131 = vmatprep.subr.bf16.mxu0 0
        %1132 = vmatpush1.bf16.msra.mxu0 0
        %1133 = vmatprep.subr.bf16.mxu0 0
        %1134 = vmatpush1.bf16.msra.mxu0 0
        %1135 = vmatprep.subr.bf16.mxu0 0
        %1136 = vmatpush1.bf16.msra.mxu0 0
        %1137 = vmatprep.subr.bf16.mxu0 0
        %1138 = vmatpush1.bf16.msra.mxu0 0
        %1139 = vmatprep.subr.bf16.mxu0 0
        %1140 = vmatpush1.bf16.msra.mxu0 0
        %1141 = vmatprep.subr.bf16.mxu0 0
        %1142 = vmatpush1.bf16.msra.mxu0 0
        %1143 = vmatprep.subr.bf16.mxu0 0
        %1144 = vmatpush1.bf16.msra.mxu0 0
        %1145 = vmatprep.mubr.bf16.mxu0 0
        %1146 = vmatmul.mubr.bf16.gmra.mrb[0].mxu0 %v1108
        %v1147 = vpop.f32.mrb[0].mxu0
        %v1148 = vadd.f32 0.0, %v1147
        %v1149 = vpop.f32.mrb[0].mxu0
        %v1150 = vpop.f32.mrb[0].mxu0
        %v1151 = vpop.f32.mrb[0].mxu0
        %1152 = vdwg.mxu0
        %v1153 = vpack.c.bf16 %v1148, %v1102
        %v1154 = vld [vmem:[#allocation20] sm:$0xff]
        %v1155 = vpack.c.bf16 %v1154, %v1154
        %s1156 = scalar_lea.vmem [#allocation10], 4
        %v1157 = vld [vmem:[%s1156] sm:$0xf]
        %v1158 = vunpack.c.l.bf16 %v1157
        %1160 = vrot.lane.b32.xlu0 %v930, 120
        %v1161 = vpop.permute.xlu0 %1160
        %1163 = vrot.lane.b32.xlu0 %v932, 120
        %v1164 = vpop.permute.xlu0 %1163
        %v1166 = vsel %vm938, %v1161, 0
        %v1169 = vsel %vm938, %v1164, 0
        %1171 = vmatprep.subr.bf16.mxu0 0
        %1172 = vmatpush1.bf16.xpose.msra.mxu0 %v1169
        %1173 = vmatprep.subr.bf16.mxu0 0
        %1174 = vmatpush1.bf16.xpose.msra.mxu0 0
        %1175 = vmatprep.subr.bf16.mxu0 0
        %1176 = vmatpush1.bf16.xpose.msra.mxu0 0
        %1177 = vmatprep.subr.bf16.mxu0 0
        %1178 = vmatpush1.bf16.xpose.msra.mxu0 0
        %1179 = vmatprep.subr.bf16.mxu0 0
        %1180 = vmatpush1.bf16.xpose.msra.mxu0 0
        %1181 = vmatprep.subr.bf16.mxu0 0
        %1182 = vmatpush1.bf16.xpose.msra.mxu0 0
        %1183 = vmatprep.subr.bf16.mxu0 0
        %1184 = vmatpush1.bf16.xpose.msra.mxu0 0
        %1185 = vmatprep.subr.bf16.mxu0 0
        %1186 = vmatpush1.bf16.xpose.msra.mxu0 0
        %1187 = vmatprep.subr.bf16.mxu0 0
        %1188 = vmatpush1.bf16.xpose.msra.mxu0 0
        %1189 = vmatprep.subr.bf16.mxu0 0
        %1190 = vmatpush1.bf16.xpose.msra.mxu0 0
        %1191 = vmatprep.subr.bf16.mxu0 0
        %1192 = vmatpush1.bf16.xpose.msra.mxu0 0
        %1193 = vmatprep.subr.bf16.mxu0 0
        %1194 = vmatpush1.bf16.xpose.msra.mxu0 0
        %1195 = vmatprep.subr.bf16.mxu0 0
        %1196 = vmatpush1.bf16.xpose.msra.mxu0 0
        %1197 = vmatprep.subr.bf16.mxu0 0
        %1198 = vmatpush1.bf16.xpose.msra.mxu0 0
        %1199 = vmatprep.subr.bf16.mxu0 0
        %1200 = vmatpush1.bf16.xpose.msra.mxu0 0
        %1201 = vmatprep.subr.bf16.mxu0 0
        %1202 = vmatpush1.bf16.xpose.msra.mxu0 0
        %1203 = vmatprep.mubr.bf16.mxu0 0
        %1204 = vmatmul.mubr.bf16.gmra.mrb[0].mxu0 %v1166
        %v1205 = vpop.f32.mrb[0].mxu0
        %v1206 = vadd.f32 %v1158, %v1205
        %v1207 = vpop.f32.mrb[0].mxu0
        %v1208 = vpop.f32.mrb[0].mxu0
        %v1209 = vpop.f32.mrb[0].mxu0
        %1210 = vdwg.mxu0
        %1212 = vrot.lane.b32.xlu0 %v931, 120
        %v1213 = vpop.permute.xlu0 %1212
        %1215 = vrot.lane.b32.xlu0 %v933, 120
        %v1216 = vpop.permute.xlu0 %1215
        %v1218 = vsel %vm938, %v1213, 0
        %v1221 = vsel %vm938, %v1216, 0
        %1223 = vmatprep.subr.bf16.mxu0 0
        %1224 = vmatpush1.bf16.xpose.msra.mxu0 %v1221
        %1225 = vmatprep.subr.bf16.mxu0 0
        %1226 = vmatpush1.bf16.xpose.msra.mxu0 0
        %1227 = vmatprep.subr.bf16.mxu0 0
        %1228 = vmatpush1.bf16.xpose.msra.mxu0 0
        %1229 = vmatprep.subr.bf16.mxu0 0
        %1230 = vmatpush1.bf16.xpose.msra.mxu0 0
        %1231 = vmatprep.subr.bf16.mxu0 0
        %1232 = vmatpush1.bf16.xpose.msra.mxu0 0
        %1233 = vmatprep.subr.bf16.mxu0 0
        %1234 = vmatpush1.bf16.xpose.msra.mxu0 0
        %1235 = vmatprep.subr.bf16.mxu0 0
        %1236 = vmatpush1.bf16.xpose.msra.mxu0 0
        %1237 = vmatprep.subr.bf16.mxu0 0
        %1238 = vmatpush1.bf16.xpose.msra.mxu0 0
        %1239 = vmatprep.subr.bf16.mxu0 0
        %1240 = vmatpush1.bf16.xpose.msra.mxu0 0
        %1241 = vmatprep.subr.bf16.mxu0 0
        %1242 = vmatpush1.bf16.xpose.msra.mxu0 0
        %1243 = vmatprep.subr.bf16.mxu0 0
        %1244 = vmatpush1.bf16.xpose.msra.mxu0 0
        %1245 = vmatprep.subr.bf16.mxu0 0
        %1246 = vmatpush1.bf16.xpose.msra.mxu0 0
        %1247 = vmatprep.subr.bf16.mxu0 0
        %1248 = vmatpush1.bf16.xpose.msra.mxu0 0
        %1249 = vmatprep.subr.bf16.mxu0 0
        %1250 = vmatpush1.bf16.xpose.msra.mxu0 0
        %1251 = vmatprep.subr.bf16.mxu0 0
        %1252 = vmatpush1.bf16.xpose.msra.mxu0 0
        %1253 = vmatprep.subr.bf16.mxu0 0
        %1254 = vmatpush1.bf16.xpose.msra.mxu0 0
        %1255 = vmatprep.mubr.bf16.mxu0 0
        %1256 = vmatmul.mubr.bf16.gmra.mrb[0].mxu0 %v1218
        %v1257 = vpop.f32.mrb[0].mxu0
        %v1258 = vadd.f32 %v1158, %v1257
        %v1259 = vpop.f32.mrb[0].mxu0
        %v1260 = vpop.f32.mrb[0].mxu0
        %v1261 = vpop.f32.mrb[0].mxu0
        %1262 = vdwg.mxu0
        %v1263 = vsel %vm928, -1e+09, %v1206
        %v1264 = vsel %vm929, -1e+09, %v1258
        %v1265 = vsel %vm938, %v1263, -inf
        %1266 = vmax.xlane.f32.xlu0 %v1265
        %v1267 = vpop.xlane.xlu0 %1266
        %v1268 = vsel %vm938, %v1264, -inf
        %1269 = vmax.xlane.f32.xlu0 %v1268
        %v1270 = vpop.xlane.xlu0 %1269
        %v1271 = vsub.f32 %v1263, %v1267
        %v1272 = vsub.f32 %v1264, %v1270
        %v1273 = vmul.f32 %v1271, 1.442695
        %v1274 = vpow.pop %v1273
        %v1275 = vmul.f32 %v1272, 1.442695
        %v1276 = vpow.pop %v1275
        %v1277 = vsel %vm938, %v1274, 0.0
        %1278 = vadd.xlane.f32.xlu0 %v1277
        %v1279 = vpop.xlane.xlu0 %1278
        %v1280 = vsel %vm938, %v1276, 0.0
        %1281 = vadd.xlane.f32.xlu0 %v1280
        %v1282 = vpop.xlane.xlu0 %1281
        %v1283 = vrcp.pop %v1279
        %v1284 = vmul.f32 %v1274, %v1283
        %v1285 = vrcp.pop %v1282
        %v1286 = vmul.f32 %v1276, %v1285
        %v1287 = vpack.c.bf16 %v1284, %v1284
        %v1288 = vpack.c.bf16 %v1286, %v1286
        %s1289 = scalar_lea.vmem %s735, 4 [#allocation24]
        %1290 = vst.msk [vmem:[%s1289] sm:$0xf] %vm1057, %v1287
        %1291 = vst.msk [vmem:[%s1289 + $0x10] sm:$0xf] %vm1057, %v1288
        %1293 = vrot.lane.b32.xlu0 %v934, 120
        %v1294 = vpop.permute.xlu0 %1293
        %v1296 = vsel %vm938, %v1287, 0
        %v1299 = vsel %vm1063, %v1294, 0
        %1301 = vmatprep.subr.bf16.mxu0 0
        %1302 = vmatpush1.bf16.msra.mxu0 %v1299
        %1303 = vmatprep.subr.bf16.mxu0 0
        %1304 = vmatpush1.bf16.msra.mxu0 0
        %1305 = vmatprep.subr.bf16.mxu0 0
        %1306 = vmatpush1.bf16.msra.mxu0 0
        %1307 = vmatprep.subr.bf16.mxu0 0
        %1308 = vmatpush1.bf16.msra.mxu0 0
        %1309 = vmatprep.subr.bf16.mxu0 0
        %1310 = vmatpush1.bf16.msra.mxu0 0
        %1311 = vmatprep.subr.bf16.mxu0 0
        %1312 = vmatpush1.bf16.msra.mxu0 0
        %1313 = vmatprep.subr.bf16.mxu0 0
        %1314 = vmatpush1.bf16.msra.mxu0 0
        %1315 = vmatprep.subr.bf16.mxu0 0
        %1316 = vmatpush1.bf16.msra.mxu0 0
        %1317 = vmatprep.subr.bf16.mxu0 0
        %1318 = vmatpush1.bf16.msra.mxu0 0
        %1319 = vmatprep.subr.bf16.mxu0 0
        %1320 = vmatpush1.bf16.msra.mxu0 0
        %1321 = vmatprep.subr.bf16.mxu0 0
        %1322 = vmatpush1.bf16.msra.mxu0 0
        %1323 = vmatprep.subr.bf16.mxu0 0
        %1324 = vmatpush1.bf16.msra.mxu0 0
        %1325 = vmatprep.subr.bf16.mxu0 0
        %1326 = vmatpush1.bf16.msra.mxu0 0
        %1327 = vmatprep.subr.bf16.mxu0 0
        %1328 = vmatpush1.bf16.msra.mxu0 0
        %1329 = vmatprep.subr.bf16.mxu0 0
        %1330 = vmatpush1.bf16.msra.mxu0 0
        %1331 = vmatprep.subr.bf16.mxu0 0
        %1332 = vmatpush1.bf16.msra.mxu0 0
        %1333 = vmatprep.mubr.bf16.mxu0 0
        %1334 = vmatmul.mubr.bf16.gmra.mrb[0].mxu0 %v1296
        %v1335 = vpop.f32.mrb[0].mxu0
        %v1336 = vadd.f32 0.0, %v1335
        %v1337 = vpop.f32.mrb[0].mxu0
        %v1338 = vpop.f32.mrb[0].mxu0
        %v1339 = vpop.f32.mrb[0].mxu0
        %1340 = vdwg.mxu0
        %1342 = vrot.lane.b32.xlu0 %v935, 120
        %v1343 = vpop.permute.xlu0 %1342
        %v1345 = vsel %vm938, %v1288, 0
        %v1348 = vsel %vm1063, %v1343, 0
        %1350 = vmatprep.subr.bf16.mxu0 0
        %1351 = vmatpush1.bf16.msra.mxu0 %v1348
        %1352 = vmatprep.subr.bf16.mxu0 0
        %1353 = vmatpush1.bf16.msra.mxu0 0
        %1354 = vmatprep.subr.bf16.mxu0 0
        %1355 = vmatpush1.bf16.msra.mxu0 0
        %1356 = vmatprep.subr.bf16.mxu0 0
        %1357 = vmatpush1.bf16.msra.mxu0 0
        %1358 = vmatprep.subr.bf16.mxu0 0
        %1359 = vmatpush1.bf16.msra.mxu0 0
        %1360 = vmatprep.subr.bf16.mxu0 0
        %1361 = vmatpush1.bf16.msra.mxu0 0
        %1362 = vmatprep.subr.bf16.mxu0 0
        %1363 = vmatpush1.bf16.msra.mxu0 0
        %1364 = vmatprep.subr.bf16.mxu0 0
        %1365 = vmatpush1.bf16.msra.mxu0 0
        %1366 = vmatprep.subr.bf16.mxu0 0
        %1367 = vmatpush1.bf16.msra.mxu0 0
        %1368 = vmatprep.subr.bf16.mxu0 0
        %1369 = vmatpush1.bf16.msra.mxu0 0
        %1370 = vmatprep.subr.bf16.mxu0 0
        %1371 = vmatpush1.bf16.msra.mxu0 0
        %1372 = vmatprep.subr.bf16.mxu0 0
        %1373 = vmatpush1.bf16.msra.mxu0 0
        %1374 = vmatprep.subr.bf16.mxu0 0
        %1375 = vmatpush1.bf16.msra.mxu0 0
        %1376 = vmatprep.subr.bf16.mxu0 0
        %1377 = vmatpush1.bf16.msra.mxu0 0
        %1378 = vmatprep.subr.bf16.mxu0 0
        %1379 = vmatpush1.bf16.msra.mxu0 0
        %1380 = vmatprep.subr.bf16.mxu0 0
        %1381 = vmatpush1.bf16.msra.mxu0 0
        %1382 = vmatprep.mubr.bf16.mxu0 0
        %1383 = vmatmul.mubr.bf16.gmra.mrb[0].mxu0 %v1345
        %v1384 = vpop.f32.mrb[0].mxu0
        %v1385 = vadd.f32 0.0, %v1384
        %v1386 = vpop.f32.mrb[0].mxu0
        %v1387 = vpop.f32.mrb[0].mxu0
        %v1388 = vpop.f32.mrb[0].mxu0
        %1389 = vdwg.mxu0
        %v1390 = vpack.c.bf16 %v1385, %v1336
        %v1391 = vld [vmem:[#allocation20 + $0x8] sm:$0xff]
        %v1392 = vpack.c.bf16 %v1391, %v1391
        %v1394 = vsel %vm938, %v1390, 0
        %v1397 = vsel %vm1063, %v1392, 0
        %1399 = vmatprep.subr.bf16.mxu0 0
        %1400 = vmatpush1.bf16.msra.mxu0 %v1397
        %1401 = vmatprep.subr.bf16.mxu0 0
        %1402 = vmatpush1.bf16.msra.mxu0 0
        %1403 = vmatprep.subr.bf16.mxu0 0
        %1404 = vmatpush1.bf16.msra.mxu0 0
        %1405 = vmatprep.subr.bf16.mxu0 0
        %1406 = vmatpush1.bf16.msra.mxu0 0
        %1407 = vmatprep.subr.bf16.mxu0 0
        %1408 = vmatpush1.bf16.msra.mxu0 0
        %1409 = vmatprep.subr.bf16.mxu0 0
        %1410 = vmatpush1.bf16.msra.mxu0 0
        %1411 = vmatprep.subr.bf16.mxu0 0
        %1412 = vmatpush1.bf16.msra.mxu0 0
        %1413 = vmatprep.subr.bf16.mxu0 0
        %1414 = vmatpush1.bf16.msra.mxu0 0
        %1415 = vmatprep.subr.bf16.mxu0 0
        %1416 = vmatpush1.bf16.msra.mxu0 0
        %1417 = vmatprep.subr.bf16.mxu0 0
        %1418 = vmatpush1.bf16.msra.mxu0 0
        %1419 = vmatprep.subr.bf16.mxu0 0
        %1420 = vmatpush1.bf16.msra.mxu0 0
        %1421 = vmatprep.subr.bf16.mxu0 0
        %1422 = vmatpush1.bf16.msra.mxu0 0
        %1423 = vmatprep.subr.bf16.mxu0 0
        %1424 = vmatpush1.bf16.msra.mxu0 0
        %1425 = vmatprep.subr.bf16.mxu0 0
        %1426 = vmatpush1.bf16.msra.mxu0 0
        %1427 = vmatprep.subr.bf16.mxu0 0
        %1428 = vmatpush1.bf16.msra.mxu0 0
        %1429 = vmatprep.subr.bf16.mxu0 0
        %1430 = vmatpush1.bf16.msra.mxu0 0
        %1431 = vmatprep.mubr.bf16.mxu0 0
        %1432 = vmatmul.mubr.bf16.gmra.mrb[0].mxu0 %v1394
        %v1433 = vpop.f32.mrb[0].mxu0
        %v1434 = vadd.f32 0.0, %v1433
        %v1435 = vpop.f32.mrb[0].mxu0
        %v1436 = vpop.f32.mrb[0].mxu0
        %v1437 = vadd.f32 0.0, %v1436
        %v1438 = vpop.f32.mrb[0].mxu0
        %1439 = vdwg.mxu0
        %v1441 = vsel %vm938, %v1153, 0
        %v1444 = vsel %vm1063, %v1155, 0
        %1446 = vmatprep.subr.bf16.mxu0 0
        %1447 = vmatpush1.bf16.msra.mxu0 %v1444
        %1448 = vmatprep.subr.bf16.mxu0 0
        %1449 = vmatpush1.bf16.msra.mxu0 0
        %1450 = vmatprep.subr.bf16.mxu0 0
        %1451 = vmatpush1.bf16.msra.mxu0 0
        %1452 = vmatprep.subr.bf16.mxu0 0
        %1453 = vmatpush1.bf16.msra.mxu0 0
        %1454 = vmatprep.subr.bf16.mxu0 0
        %1455 = vmatpush1.bf16.msra.mxu0 0
        %1456 = vmatprep.subr.bf16.mxu0 0
        %1457 = vmatpush1.bf16.msra.mxu0 0
        %1458 = vmatprep.subr.bf16.mxu0 0
        %1459 = vmatpush1.bf16.msra.mxu0 0
        %1460 = vmatprep.subr.bf16.mxu0 0
        %1461 = vmatpush1.bf16.msra.mxu0 0
        %1462 = vmatprep.subr.bf16.mxu0 0
        %1463 = vmatpush1.bf16.msra.mxu0 0
        %1464 = vmatprep.subr.bf16.mxu0 0
        %1465 = vmatpush1.bf16.msra.mxu0 0
        %1466 = vmatprep.subr.bf16.mxu0 0
        %1467 = vmatpush1.bf16.msra.mxu0 0
        %1468 = vmatprep.subr.bf16.mxu0 0
        %1469 = vmatpush1.bf16.msra.mxu0 0
        %1470 = vmatprep.subr.bf16.mxu0 0
        %1471 = vmatpush1.bf16.msra.mxu0 0
        %1472 = vmatprep.subr.bf16.mxu0 0
        %1473 = vmatpush1.bf16.msra.mxu0 0
        %1474 = vmatprep.subr.bf16.mxu0 0
        %1475 = vmatpush1.bf16.msra.mxu0 0
        %1476 = vmatprep.subr.bf16.mxu0 0
        %1477 = vmatpush1.bf16.msra.mxu0 0
        %1478 = vmatprep.mubr.bf16.mxu0 0
        %1479 = vmatmul.mubr.bf16.gmra.mrb[0].mxu0 %v1441
        %v1480 = vpop.f32.mrb[0].mxu0
        %v1481 = vadd.f32 %v1434, %v1480
        %v1482 = vpop.f32.mrb[0].mxu0
        %v1483 = vpop.f32.mrb[0].mxu0
        %v1484 = vadd.f32 %v1437, %v1483
        %v1485 = vpop.f32.mrb[0].mxu0
        %1486 = vdwg.mxu0
        %s1487 = scalar_lea.vmem [#allocation10], 8
        %v1488 = vld [vmem:[%s1487] sm:$0xf]
        %v1489 = vunpack.c.l.bf16 %v1488
        %1490 = vrot.lane.b32.xlu0 %v930, 112
        %v1491 = vpop.permute.xlu0 %1490
        %1492 = vrot.lane.b32.xlu0 %v932, 112
        %v1493 = vpop.permute.xlu0 %1492
        %v1495 = vsel %vm938, %v1491, 0
        %v1498 = vsel %vm938, %v1493, 0
        %1500 = vmatprep.subr.bf16.mxu0 0
        %1501 = vmatpush1.bf16.xpose.msra.mxu0 %v1498
        %1502 = vmatprep.subr.bf16.mxu0 0
        %1503 = vmatpush1.bf16.xpose.msra.mxu0 0
        %1504 = vmatprep.subr.bf16.mxu0 0
        %1505 = vmatpush1.bf16.xpose.msra.mxu0 0
        %1506 = vmatprep.subr.bf16.mxu0 0
        %1507 = vmatpush1.bf16.xpose.msra.mxu0 0
        %1508 = vmatprep.subr.bf16.mxu0 0
        %1509 = vmatpush1.bf16.xpose.msra.mxu0 0
        %1510 = vmatprep.subr.bf16.mxu0 0
        %1511 = vmatpush1.bf16.xpose.msra.mxu0 0
        %1512 = vmatprep.subr.bf16.mxu0 0
        %1513 = vmatpush1.bf16.xpose.msra.mxu0 0
        %1514 = vmatprep.subr.bf16.mxu0 0
        %1515 = vmatpush1.bf16.xpose.msra.mxu0 0
        %1516 = vmatprep.subr.bf16.mxu0 0
        %1517 = vmatpush1.bf16.xpose.msra.mxu0 0
        %1518 = vmatprep.subr.bf16.mxu0 0
        %1519 = vmatpush1.bf16.xpose.msra.mxu0 0
        %1520 = vmatprep.subr.bf16.mxu0 0
        %1521 = vmatpush1.bf16.xpose.msra.mxu0 0
        %1522 = vmatprep.subr.bf16.mxu0 0
        %1523 = vmatpush1.bf16.xpose.msra.mxu0 0
        %1524 = vmatprep.subr.bf16.mxu0 0
        %1525 = vmatpush1.bf16.xpose.msra.mxu0 0
        %1526 = vmatprep.subr.bf16.mxu0 0
        %1527 = vmatpush1.bf16.xpose.msra.mxu0 0
        %1528 = vmatprep.subr.bf16.mxu0 0
        %1529 = vmatpush1.bf16.xpose.msra.mxu0 0
        %1530 = vmatprep.subr.bf16.mxu0 0
        %1531 = vmatpush1.bf16.xpose.msra.mxu0 0
        %1532 = vmatprep.mubr.bf16.mxu0 0
        %1533 = vmatmul.mubr.bf16.gmra.mrb[0].mxu0 %v1495
        %v1534 = vpop.f32.mrb[0].mxu0
        %v1535 = vadd.f32 %v1489, %v1534
        %v1536 = vpop.f32.mrb[0].mxu0
        %v1537 = vpop.f32.mrb[0].mxu0
        %v1538 = vpop.f32.mrb[0].mxu0
        %1539 = vdwg.mxu0
        %1540 = vrot.lane.b32.xlu0 %v931, 112
        %v1541 = vpop.permute.xlu0 %1540
        %1542 = vrot.lane.b32.xlu0 %v933, 112
        %v1543 = vpop.permute.xlu0 %1542
        %v1545 = vsel %vm938, %v1541, 0
        %v1548 = vsel %vm938, %v1543, 0
        %1550 = vmatprep.subr.bf16.mxu0 0
        %1551 = vmatpush1.bf16.xpose.msra.mxu0 %v1548
        %1552 = vmatprep.subr.bf16.mxu0 0
        %1553 = vmatpush1.bf16.xpose.msra.mxu0 0
        %1554 = vmatprep.subr.bf16.mxu0 0
        %1555 = vmatpush1.bf16.xpose.msra.mxu0 0
        %1556 = vmatprep.subr.bf16.mxu0 0
        %1557 = vmatpush1.bf16.xpose.msra.mxu0 0
        %1558 = vmatprep.subr.bf16.mxu0 0
        %1559 = vmatpush1.bf16.xpose.msra.mxu0 0
        %1560 = vmatprep.subr.bf16.mxu0 0
        %1561 = vmatpush1.bf16.xpose.msra.mxu0 0
        %1562 = vmatprep.subr.bf16.mxu0 0
        %1563 = vmatpush1.bf16.xpose.msra.mxu0 0
        %1564 = vmatprep.subr.bf16.mxu0 0
        %1565 = vmatpush1.bf16.xpose.msra.mxu0 0
        %1566 = vmatprep.subr.bf16.mxu0 0
        %1567 = vmatpush1.bf16.xpose.msra.mxu0 0
        %1568 = vmatprep.subr.bf16.mxu0 0
        %1569 = vmatpush1.bf16.xpose.msra.mxu0 0
        %1570 = vmatprep.subr.bf16.mxu0 0
        %1571 = vmatpush1.bf16.xpose.msra.mxu0 0
        %1572 = vmatprep.subr.bf16.mxu0 0
        %1573 = vmatpush1.bf16.xpose.msra.mxu0 0
        %1574 = vmatprep.subr.bf16.mxu0 0
        %1575 = vmatpush1.bf16.xpose.msra.mxu0 0
        %1576 = vmatprep.subr.bf16.mxu0 0
        %1577 = vmatpush1.bf16.xpose.msra.mxu0 0
        %1578 = vmatprep.subr.bf16.mxu0 0
        %1579 = vmatpush1.bf16.xpose.msra.mxu0 0
        %1580 = vmatprep.subr.bf16.mxu0 0
        %1581 = vmatpush1.bf16.xpose.msra.mxu0 0
        %1582 = vmatprep.mubr.bf16.mxu0 0
        %1583 = vmatmul.mubr.bf16.gmra.mrb[0].mxu0 %v1545
        %v1584 = vpop.f32.mrb[0].mxu0
        %v1585 = vadd.f32 %v1489, %v1584
        %v1586 = vpop.f32.mrb[0].mxu0
        %v1587 = vpop.f32.mrb[0].mxu0
        %v1588 = vpop.f32.mrb[0].mxu0
        %1589 = vdwg.mxu0
        %v1590 = vsel %vm928, -1e+09, %v1535
        %v1591 = vsel %vm929, -1e+09, %v1585
        %v1592 = vsel %vm938, %v1590, -inf
        %1593 = vmax.xlane.f32.xlu0 %v1592
        %v1594 = vpop.xlane.xlu0 %1593
        %v1595 = vsel %vm938, %v1591, -inf
        %1596 = vmax.xlane.f32.xlu0 %v1595
        %v1597 = vpop.xlane.xlu0 %1596
        %v1598 = vsub.f32 %v1590, %v1594
        %v1599 = vsub.f32 %v1591, %v1597
        %v1600 = vmul.f32 %v1598, 1.442695
        %v1601 = vpow.pop %v1600
        %v1602 = vmul.f32 %v1599, 1.442695
        %v1603 = vpow.pop %v1602
        %v1604 = vsel %vm938, %v1601, 0.0
        %1605 = vadd.xlane.f32.xlu0 %v1604
        %v1606 = vpop.xlane.xlu0 %1605
        %v1607 = vsel %vm938, %v1603, 0.0
        %1608 = vadd.xlane.f32.xlu0 %v1607
        %v1609 = vpop.xlane.xlu0 %1608
        %v1610 = vrcp.pop %v1606
        %v1611 = vmul.f32 %v1601, %v1610
        %v1612 = vrcp.pop %v1609
        %v1613 = vmul.f32 %v1603, %v1612
        %v1614 = vpack.c.bf16 %v1611, %v1611
        %v1615 = vpack.c.bf16 %v1613, %v1613
        %s1616 = scalar_lea.vmem %s735, 8 [#allocation24]
        %1617 = vst.msk [vmem:[%s1616] sm:$0xf] %vm1057, %v1614
        %1618 = vst.msk [vmem:[%s1616 + $0x10] sm:$0xf] %vm1057, %v1615
        %1619 = vrot.lane.b32.xlu0 %v934, 112
        %v1620 = vpop.permute.xlu0 %1619
        %v1622 = vsel %vm938, %v1614, 0
        %v1625 = vsel %vm1063, %v1620, 0
        %1627 = vmatprep.subr.bf16.mxu0 0
        %1628 = vmatpush1.bf16.msra.mxu0 %v1625
        %1629 = vmatprep.subr.bf16.mxu0 0
        %1630 = vmatpush1.bf16.msra.mxu0 0
        %1631 = vmatprep.subr.bf16.mxu0 0
        %1632 = vmatpush1.bf16.msra.mxu0 0
        %1633 = vmatprep.subr.bf16.mxu0 0
        %1634 = vmatpush1.bf16.msra.mxu0 0
        %1635 = vmatprep.subr.bf16.mxu0 0
        %1636 = vmatpush1.bf16.msra.mxu0 0
        %1637 = vmatprep.subr.bf16.mxu0 0
        %1638 = vmatpush1.bf16.msra.mxu0 0
        %1639 = vmatprep.subr.bf16.mxu0 0
        %1640 = vmatpush1.bf16.msra.mxu0 0
        %1641 = vmatprep.subr.bf16.mxu0 0
        %1642 = vmatpush1.bf16.msra.mxu0 0
        %1643 = vmatprep.subr.bf16.mxu0 0
        %1644 = vmatpush1.bf16.msra.mxu0 0
        %1645 = vmatprep.subr.bf16.mxu0 0
        %1646 = vmatpush1.bf16.msra.mxu0 0
        %1647 = vmatprep.subr.bf16.mxu0 0
        %1648 = vmatpush1.bf16.msra.mxu0 0
        %1649 = vmatprep.subr.bf16.mxu0 0
        %1650 = vmatpush1.bf16.msra.mxu0 0
        %1651 = vmatprep.subr.bf16.mxu0 0
        %1652 = vmatpush1.bf16.msra.mxu0 0
        %1653 = vmatprep.subr.bf16.mxu0 0
        %1654 = vmatpush1.bf16.msra.mxu0 0
        %1655 = vmatprep.subr.bf16.mxu0 0
        %1656 = vmatpush1.bf16.msra.mxu0 0
        %1657 = vmatprep.subr.bf16.mxu0 0
        %1658 = vmatpush1.bf16.msra.mxu0 0
        %1659 = vmatprep.mubr.bf16.mxu0 0
        %1660 = vmatmul.mubr.bf16.gmra.mrb[0].mxu0 %v1622
        %v1661 = vpop.f32.mrb[0].mxu0
        %v1662 = vadd.f32 0.0, %v1661
        %v1663 = vpop.f32.mrb[0].mxu0
        %v1664 = vpop.f32.mrb[0].mxu0
        %v1665 = vpop.f32.mrb[0].mxu0
        %1666 = vdwg.mxu0
        %1667 = vrot.lane.b32.xlu0 %v935, 112
        %v1668 = vpop.permute.xlu0 %1667
        %v1670 = vsel %vm938, %v1615, 0
        %v1673 = vsel %vm1063, %v1668, 0
        %1675 = vmatprep.subr.bf16.mxu0 0
        %1676 = vmatpush1.bf16.msra.mxu0 %v1673
        %1677 = vmatprep.subr.bf16.mxu0 0
        %1678 = vmatpush1.bf16.msra.mxu0 0
        %1679 = vmatprep.subr.bf16.mxu0 0
        %1680 = vmatpush1.bf16.msra.mxu0 0
        %1681 = vmatprep.subr.bf16.mxu0 0
        %1682 = vmatpush1.bf16.msra.mxu0 0
        %1683 = vmatprep.subr.bf16.mxu0 0
        %1684 = vmatpush1.bf16.msra.mxu0 0
        %1685 = vmatprep.subr.bf16.mxu0 0
        %1686 = vmatpush1.bf16.msra.mxu0 0
        %1687 = vmatprep.subr.bf16.mxu0 0
        %1688 = vmatpush1.bf16.msra.mxu0 0
        %1689 = vmatprep.subr.bf16.mxu0 0
        %1690 = vmatpush1.bf16.msra.mxu0 0
        %1691 = vmatprep.subr.bf16.mxu0 0
        %1692 = vmatpush1.bf16.msra.mxu0 0
        %1693 = vmatprep.subr.bf16.mxu0 0
        %1694 = vmatpush1.bf16.msra.mxu0 0
        %1695 = vmatprep.subr.bf16.mxu0 0
        %1696 = vmatpush1.bf16.msra.mxu0 0
        %1697 = vmatprep.subr.bf16.mxu0 0
        %1698 = vmatpush1.bf16.msra.mxu0 0
        %1699 = vmatprep.subr.bf16.mxu0 0
        %1700 = vmatpush1.bf16.msra.mxu0 0
        %1701 = vmatprep.subr.bf16.mxu0 0
        %1702 = vmatpush1.bf16.msra.mxu0 0
        %1703 = vmatprep.subr.bf16.mxu0 0
        %1704 = vmatpush1.bf16.msra.mxu0 0
        %1705 = vmatprep.subr.bf16.mxu0 0
        %1706 = vmatpush1.bf16.msra.mxu0 0
        %1707 = vmatprep.mubr.bf16.mxu0 0
        %1708 = vmatmul.mubr.bf16.gmra.mrb[0].mxu0 %v1670
        %v1709 = vpop.f32.mrb[0].mxu0
        %v1710 = vadd.f32 0.0, %v1709
        %v1711 = vpop.f32.mrb[0].mxu0
        %v1712 = vpop.f32.mrb[0].mxu0
        %v1713 = vpop.f32.mrb[0].mxu0
        %1714 = vdwg.mxu0
        %v1715 = vpack.c.bf16 %v1710, %v1662
        %v1716 = vld [vmem:[#allocation20 + $0x10] sm:$0xff]
        %v1717 = vpack.c.bf16 %v1716, %v1716
        %v1719 = vsel %vm938, %v1715, 0
        %v1722 = vsel %vm1063, %v1717, 0
        %1724 = vmatprep.subr.bf16.mxu0 0
        %1725 = vmatpush1.bf16.msra.mxu0 %v1722
        %1726 = vmatprep.subr.bf16.mxu0 0
        %1727 = vmatpush1.bf16.msra.mxu0 0
        %1728 = vmatprep.subr.bf16.mxu0 0
        %1729 = vmatpush1.bf16.msra.mxu0 0
        %1730 = vmatprep.subr.bf16.mxu0 0
        %1731 = vmatpush1.bf16.msra.mxu0 0
        %1732 = vmatprep.subr.bf16.mxu0 0
        %1733 = vmatpush1.bf16.msra.mxu0 0
        %1734 = vmatprep.subr.bf16.mxu0 0
        %1735 = vmatpush1.bf16.msra.mxu0 0
        %1736 = vmatprep.subr.bf16.mxu0 0
        %1737 = vmatpush1.bf16.msra.mxu0 0
        %1738 = vmatprep.subr.bf16.mxu0 0
        %1739 = vmatpush1.bf16.msra.mxu0 0
        %1740 = vmatprep.subr.bf16.mxu0 0
        %1741 = vmatpush1.bf16.msra.mxu0 0
        %1742 = vmatprep.subr.bf16.mxu0 0
        %1743 = vmatpush1.bf16.msra.mxu0 0
        %1744 = vmatprep.subr.bf16.mxu0 0
        %1745 = vmatpush1.bf16.msra.mxu0 0
        %1746 = vmatprep.subr.bf16.mxu0 0
        %1747 = vmatpush1.bf16.msra.mxu0 0
        %1748 = vmatprep.subr.bf16.mxu0 0
        %1749 = vmatpush1.bf16.msra.mxu0 0
        %1750 = vmatprep.subr.bf16.mxu0 0
        %1751 = vmatpush1.bf16.msra.mxu0 0
        %1752 = vmatprep.subr.bf16.mxu0 0
        %1753 = vmatpush1.bf16.msra.mxu0 0
        %1754 = vmatprep.subr.bf16.mxu0 0
        %1755 = vmatpush1.bf16.msra.mxu0 0
        %1756 = vmatprep.mubr.bf16.mxu0 0
        %1757 = vmatmul.mubr.bf16.gmra.mrb[0].mxu0 %v1719
        %v1758 = vpop.f32.mrb[0].mxu0
        %v1759 = vadd.f32 0.0, %v1758
        %v1760 = vpop.f32.mrb[0].mxu0
        %v1761 = vpop.f32.mrb[0].mxu0
        %v1762 = vadd.f32 0.0, %v1761
        %v1763 = vpop.f32.mrb[0].mxu0
        %1764 = vdwg.mxu0
        %v1765 = vadd.f32 %v1481, %v1759
        %v1766 = vadd.f32 %v1484, %v1762
        %s1767 = scalar_lea.vmem [#allocation10], 12
        %v1768 = vld [vmem:[%s1767] sm:$0xf]
        %v1769 = vunpack.c.l.bf16 %v1768
        %1770 = vrot.lane.b32.xlu0 %v930, 104
        %v1771 = vpop.permute.xlu0 %1770
        %1772 = vrot.lane.b32.xlu0 %v932, 104
        %v1773 = vpop.permute.xlu0 %1772
        %v1775 = vsel %vm938, %v1771, 0
        %v1778 = vsel %vm938, %v1773, 0
        %1780 = vmatprep.subr.bf16.mxu0 0
        %1781 = vmatpush1.bf16.xpose.msra.mxu0 %v1778
        %1782 = vmatprep.subr.bf16.mxu0 0
        %1783 = vmatpush1.bf16.xpose.msra.mxu0 0
        %1784 = vmatprep.subr.bf16.mxu0 0
        %1785 = vmatpush1.bf16.xpose.msra.mxu0 0
        %1786 = vmatprep.subr.bf16.mxu0 0
        %1787 = vmatpush1.bf16.xpose.msra.mxu0 0
        %1788 = vmatprep.subr.bf16.mxu0 0
        %1789 = vmatpush1.bf16.xpose.msra.mxu0 0
        %1790 = vmatprep.subr.bf16.mxu0 0
        %1791 = vmatpush1.bf16.xpose.msra.mxu0 0
        %1792 = vmatprep.subr.bf16.mxu0 0
        %1793 = vmatpush1.bf16.xpose.msra.mxu0 0
        %1794 = vmatprep.subr.bf16.mxu0 0
        %1795 = vmatpush1.bf16.xpose.msra.mxu0 0
        %1796 = vmatprep.subr.bf16.mxu0 0
        %1797 = vmatpush1.bf16.xpose.msra.mxu0 0
        %1798 = vmatprep.subr.bf16.mxu0 0
        %1799 = vmatpush1.bf16.xpose.msra.mxu0 0
        %1800 = vmatprep.subr.bf16.mxu0 0
        %1801 = vmatpush1.bf16.xpose.msra.mxu0 0
        %1802 = vmatprep.subr.bf16.mxu0 0
        %1803 = vmatpush1.bf16.xpose.msra.mxu0 0
        %1804 = vmatprep.subr.bf16.mxu0 0
        %1805 = vmatpush1.bf16.xpose.msra.mxu0 0
        %1806 = vmatprep.subr.bf16.mxu0 0
        %1807 = vmatpush1.bf16.xpose.msra.mxu0 0
        %1808 = vmatprep.subr.bf16.mxu0 0
        %1809 = vmatpush1.bf16.xpose.msra.mxu0 0
        %1810 = vmatprep.subr.bf16.mxu0 0
        %1811 = vmatpush1.bf16.xpose.msra.mxu0 0
        %1812 = vmatprep.mubr.bf16.mxu0 0
        %1813 = vmatmul.mubr.bf16.gmra.mrb[0].mxu0 %v1775
        %v1814 = vpop.f32.mrb[0].mxu0
        %v1815 = vadd.f32 %v1769, %v1814
        %v1816 = vpop.f32.mrb[0].mxu0
        %v1817 = vpop.f32.mrb[0].mxu0
        %v1818 = vpop.f32.mrb[0].mxu0
        %1819 = vdwg.mxu0
        %1820 = vrot.lane.b32.xlu0 %v931, 104
        %v1821 = vpop.permute.xlu0 %1820
        %1822 = vrot.lane.b32.xlu0 %v933, 104
        %v1823 = vpop.permute.xlu0 %1822
        %v1825 = vsel %vm938, %v1821, 0
        %v1828 = vsel %vm938, %v1823, 0
        %1830 = vmatprep.subr.bf16.mxu0 0
        %1831 = vmatpush1.bf16.xpose.msra.mxu0 %v1828
        %1832 = vmatprep.subr.bf16.mxu0 0
        %1833 = vmatpush1.bf16.xpose.msra.mxu0 0
        %1834 = vmatprep.subr.bf16.mxu0 0
        %1835 = vmatpush1.bf16.xpose.msra.mxu0 0
        %1836 = vmatprep.subr.bf16.mxu0 0
        %1837 = vmatpush1.bf16.xpose.msra.mxu0 0
        %1838 = vmatprep.subr.bf16.mxu0 0
        %1839 = vmatpush1.bf16.xpose.msra.mxu0 0
        %1840 = vmatprep.subr.bf16.mxu0 0
        %1841 = vmatpush1.bf16.xpose.msra.mxu0 0
        %1842 = vmatprep.subr.bf16.mxu0 0
        %1843 = vmatpush1.bf16.xpose.msra.mxu0 0
        %1844 = vmatprep.subr.bf16.mxu0 0
        %1845 = vmatpush1.bf16.xpose.msra.mxu0 0
        %1846 = vmatprep.subr.bf16.mxu0 0
        %1847 = vmatpush1.bf16.xpose.msra.mxu0 0
        %1848 = vmatprep.subr.bf16.mxu0 0
        %1849 = vmatpush1.bf16.xpose.msra.mxu0 0
        %1850 = vmatprep.subr.bf16.mxu0 0
        %1851 = vmatpush1.bf16.xpose.msra.mxu0 0
        %1852 = vmatprep.subr.bf16.mxu0 0
        %1853 = vmatpush1.bf16.xpose.msra.mxu0 0
        %1854 = vmatprep.subr.bf16.mxu0 0
        %1855 = vmatpush1.bf16.xpose.msra.mxu0 0
        %1856 = vmatprep.subr.bf16.mxu0 0
        %1857 = vmatpush1.bf16.xpose.msra.mxu0 0
        %1858 = vmatprep.subr.bf16.mxu0 0
        %1859 = vmatpush1.bf16.xpose.msra.mxu0 0
        %1860 = vmatprep.subr.bf16.mxu0 0
        %1861 = vmatpush1.bf16.xpose.msra.mxu0 0
        %1862 = vmatprep.mubr.bf16.mxu0 0
        %1863 = vmatmul.mubr.bf16.gmra.mrb[0].mxu0 %v1825
        %v1864 = vpop.f32.mrb[0].mxu0
        %v1865 = vadd.f32 %v1769, %v1864
        %v1866 = vpop.f32.mrb[0].mxu0
        %v1867 = vpop.f32.mrb[0].mxu0
        %v1868 = vpop.f32.mrb[0].mxu0
        %1869 = vdwg.mxu0
        %v1870 = vsel %vm928, -1e+09, %v1815
        %v1871 = vsel %vm929, -1e+09, %v1865
        %v1872 = vsel %vm938, %v1870, -inf
        %1873 = vmax.xlane.f32.xlu0 %v1872
        %v1874 = vpop.xlane.xlu0 %1873
        %v1875 = vsel %vm938, %v1871, -inf
        %1876 = vmax.xlane.f32.xlu0 %v1875
        %v1877 = vpop.xlane.xlu0 %1876
        %v1878 = vsub.f32 %v1870, %v1874
        %v1879 = vsub.f32 %v1871, %v1877
        %v1880 = vmul.f32 %v1878, 1.442695
        %v1881 = vpow.pop %v1880
        %v1882 = vmul.f32 %v1879, 1.442695
        %v1883 = vpow.pop %v1882
        %v1884 = vsel %vm938, %v1881, 0.0
        %1885 = vadd.xlane.f32.xlu0 %v1884
        %v1886 = vpop.xlane.xlu0 %1885
        %v1887 = vsel %vm938, %v1883, 0.0
        %1888 = vadd.xlane.f32.xlu0 %v1887
        %v1889 = vpop.xlane.xlu0 %1888
        %v1890 = vrcp.pop %v1886
        %v1891 = vmul.f32 %v1881, %v1890
        %v1892 = vrcp.pop %v1889
        %v1893 = vmul.f32 %v1883, %v1892
        %v1894 = vpack.c.bf16 %v1891, %v1891
        %v1895 = vpack.c.bf16 %v1893, %v1893
        %s1896 = scalar_lea.vmem %s735, 12 [#allocation24]
        %1897 = vst.msk [vmem:[%s1896] sm:$0xf] %vm1057, %v1894
        %1898 = vst.msk [vmem:[%s1896 + $0x10] sm:$0xf] %vm1057, %v1895
        %1899 = vrot.lane.b32.xlu0 %v934, 104
        %v1900 = vpop.permute.xlu0 %1899
        %v1902 = vsel %vm938, %v1894, 0
        %v1905 = vsel %vm1063, %v1900, 0
        %1907 = vmatprep.subr.bf16.mxu0 0
        %1908 = vmatpush1.bf16.msra.mxu0 %v1905
        %1909 = vmatprep.subr.bf16.mxu0 0
        %1910 = vmatpush1.bf16.msra.mxu0 0
        %1911 = vmatprep.subr.bf16.mxu0 0
        %1912 = vmatpush1.bf16.msra.mxu0 0
        %1913 = vmatprep.subr.bf16.mxu0 0
        %1914 = vmatpush1.bf16.msra.mxu0 0
        %1915 = vmatprep.subr.bf16.mxu0 0
        %1916 = vmatpush1.bf16.msra.mxu0 0
        %1917 = vmatprep.subr.bf16.mxu0 0
        %1918 = vmatpush1.bf16.msra.mxu0 0
        %1919 = vmatprep.subr.bf16.mxu0 0
        %1920 = vmatpush1.bf16.msra.mxu0 0
        %1921 = vmatprep.subr.bf16.mxu0 0
        %1922 = vmatpush1.bf16.msra.mxu0 0
        %1923 = vmatprep.subr.bf16.mxu0 0
        %1924 = vmatpush1.bf16.msra.mxu0 0
        %1925 = vmatprep.subr.bf16.mxu0 0
        %1926 = vmatpush1.bf16.msra.mxu0 0
        %1927 = vmatprep.subr.bf16.mxu0 0
        %1928 = vmatpush1.bf16.msra.mxu0 0
        %1929 = vmatprep.subr.bf16.mxu0 0
        %1930 = vmatpush1.bf16.msra.mxu0 0
        %1931 = vmatprep.subr.bf16.mxu0 0
        %1932 = vmatpush1.bf16.msra.mxu0 0
        %1933 = vmatprep.subr.bf16.mxu0 0
        %1934 = vmatpush1.bf16.msra.mxu0 0
        %1935 = vmatprep.subr.bf16.mxu0 0
        %1936 = vmatpush1.bf16.msra.mxu0 0
        %1937 = vmatprep.subr.bf16.mxu0 0
        %1938 = vmatpush1.bf16.msra.mxu0 0
        %1939 = vmatprep.mubr.bf16.mxu0 0
        %1940 = vmatmul.mubr.bf16.gmra.mrb[0].mxu0 %v1902
        %v1941 = vpop.f32.mrb[0].mxu0
        %v1942 = vadd.f32 0.0, %v1941
        %v1943 = vpop.f32.mrb[0].mxu0
        %v1944 = vpop.f32.mrb[0].mxu0
        %v1945 = vpop.f32.mrb[0].mxu0
        %1946 = vdwg.mxu0
        %1947 = vrot.lane.b32.xlu0 %v935, 104
        %v1948 = vpop.permute.xlu0 %1947
        %v1950 = vsel %vm938, %v1895, 0
        %v1953 = vsel %vm1063, %v1948, 0
        %1955 = vmatprep.subr.bf16.mxu0 0
        %1956 = vmatpush1.bf16.msra.mxu0 %v1953
        %1957 = vmatprep.subr.bf16.mxu0 0
        %1958 = vmatpush1.bf16.msra.mxu0 0
        %1959 = vmatprep.subr.bf16.mxu0 0
        %1960 = vmatpush1.bf16.msra.mxu0 0
        %1961 = vmatprep.subr.bf16.mxu0 0
        %1962 = vmatpush1.bf16.msra.mxu0 0
        %1963 = vmatprep.subr.bf16.mxu0 0
        %1964 = vmatpush1.bf16.msra.mxu0 0
        %1965 = vmatprep.subr.bf16.mxu0 0
        %1966 = vmatpush1.bf16.msra.mxu0 0
        %1967 = vmatprep.subr.bf16.mxu0 0
        %1968 = vmatpush1.bf16.msra.mxu0 0
        %1969 = vmatprep.subr.bf16.mxu0 0
        %1970 = vmatpush1.bf16.msra.mxu0 0
        %1971 = vmatprep.subr.bf16.mxu0 0
        %1972 = vmatpush1.bf16.msra.mxu0 0
        %1973 = vmatprep.subr.bf16.mxu0 0
        %1974 = vmatpush1.bf16.msra.mxu0 0
        %1975 = vmatprep.subr.bf16.mxu0 0
        %1976 = vmatpush1.bf16.msra.mxu0 0
        %1977 = vmatprep.subr.bf16.mxu0 0
        %1978 = vmatpush1.bf16.msra.mxu0 0
        %1979 = vmatprep.subr.bf16.mxu0 0
        %1980 = vmatpush1.bf16.msra.mxu0 0
        %1981 = vmatprep.subr.bf16.mxu0 0
        %1982 = vmatpush1.bf16.msra.mxu0 0
        %1983 = vmatprep.subr.bf16.mxu0 0
        %1984 = vmatpush1.bf16.msra.mxu0 0
        %1985 = vmatprep.subr.bf16.mxu0 0
        %1986 = vmatpush1.bf16.msra.mxu0 0
        %1987 = vmatprep.mubr.bf16.mxu0 0
        %1988 = vmatmul.mubr.bf16.gmra.mrb[0].mxu0 %v1950
        %v1989 = vpop.f32.mrb[0].mxu0
        %v1990 = vadd.f32 0.0, %v1989
        %v1991 = vpop.f32.mrb[0].mxu0
        %v1992 = vpop.f32.mrb[0].mxu0
        %v1993 = vpop.f32.mrb[0].mxu0
        %1994 = vdwg.mxu0
        %v1995 = vpack.c.bf16 %v1990, %v1942
        %v1996 = vld [vmem:[#allocation20 + $0x18] sm:$0xff]
        %v1997 = vpack.c.bf16 %v1996, %v1996
        %v1999 = vsel %vm938, %v1995, 0
        %v2002 = vsel %vm1063, %v1997, 0
        %2004 = vmatprep.subr.bf16.mxu0 0
        %2005 = vmatpush1.bf16.msra.mxu0 %v2002
        %2006 = vmatprep.subr.bf16.mxu0 0
        %2007 = vmatpush1.bf16.msra.mxu0 0
        %2008 = vmatprep.subr.bf16.mxu0 0
        %2009 = vmatpush1.bf16.msra.mxu0 0
        %2010 = vmatprep.subr.bf16.mxu0 0
        %2011 = vmatpush1.bf16.msra.mxu0 0
        %2012 = vmatprep.subr.bf16.mxu0 0
        %2013 = vmatpush1.bf16.msra.mxu0 0
        %2014 = vmatprep.subr.bf16.mxu0 0
        %2015 = vmatpush1.bf16.msra.mxu0 0
        %2016 = vmatprep.subr.bf16.mxu0 0
        %2017 = vmatpush1.bf16.msra.mxu0 0
        %2018 = vmatprep.subr.bf16.mxu0 0
        %2019 = vmatpush1.bf16.msra.mxu0 0
        %2020 = vmatprep.subr.bf16.mxu0 0
        %2021 = vmatpush1.bf16.msra.mxu0 0
        %2022 = vmatprep.subr.bf16.mxu0 0
        %2023 = vmatpush1.bf16.msra.mxu0 0
        %2024 = vmatprep.subr.bf16.mxu0 0
        %2025 = vmatpush1.bf16.msra.mxu0 0
        %2026 = vmatprep.subr.bf16.mxu0 0
        %2027 = vmatpush1.bf16.msra.mxu0 0
        %2028 = vmatprep.subr.bf16.mxu0 0
        %2029 = vmatpush1.bf16.msra.mxu0 0
        %2030 = vmatprep.subr.bf16.mxu0 0
        %2031 = vmatpush1.bf16.msra.mxu0 0
        %2032 = vmatprep.subr.bf16.mxu0 0
        %2033 = vmatpush1.bf16.msra.mxu0 0
        %2034 = vmatprep.subr.bf16.mxu0 0
        %2035 = vmatpush1.bf16.msra.mxu0 0
        %2036 = vmatprep.mubr.bf16.mxu0 0
        %2037 = vmatmul.mubr.bf16.gmra.mrb[0].mxu0 %v1999
        %v2038 = vpop.f32.mrb[0].mxu0
        %v2039 = vadd.f32 0.0, %v2038
        %v2040 = vpop.f32.mrb[0].mxu0
        %v2041 = vpop.f32.mrb[0].mxu0
        %v2042 = vadd.f32 0.0, %v2041
        %v2043 = vpop.f32.mrb[0].mxu0
        %2044 = vdwg.mxu0
        %v2045 = vadd.f32 %v1765, %v2039
        %v2046 = vadd.f32 %v1766, %v2042
        %v2047 = vld [vmem:[#allocation22] sm:$0x1]
        %v2049 = vlaneseq
        %v2050 = vshrl.u32 %v2049, 7
        %v2051 = vsub.s32 0, %v2050
        %v2052 = vrot.slane %v2047, %v2051
        %v2054 = vadd.f32 %v2045, %v2052
        %v2055 = vadd.f32 %v2046, %v2052
        %2056 = vst.msk [vmem:[%s728] sm:$0xff] %vm765, %v2054
        %2057 = vst.msk [vmem:[%s728 + $0x8] sm:$0xff] %vm765, %v2055
        %s2058 = sand.u32 %s346, 1
        %s2059 = scalar_lea.sflag [#allocation4], %s2058
        %s2060 = sand.u32 %s346, 1
        %s2061 = smul.addr %s2060, 16
        %s2062 = scalar_lea.vmem [#allocation23], %s2061
        %s2063 = sand.u32 %s372, 1
        %s2064 = scalar_lea.sflag [#allocation25], %s2063
        %s2065 = sand.u32 %s372, 1
        %s2066 = smul.addr %s2065, 32
        %s2067 = scalar_lea.vmem [#allocation24], %s2066
        // Predicated region
        $region125: #{tpu_custom_call.1} parent=71 // pred_check
          %p2068 = pneg %p356
        $region126: #{tpu_custom_call.1} parent=71 // pred_check_branch
          %2070 = sbr.rel (%p2068) target = $region128
        $region127: #{tpu_custom_call.1} parent=71 // pred_region
          %s2071 = smul.u32 2, %s45
          %s2073 = ssub.s32 256, 256
          %2074 = vsyncadd %s2059, %s2073
          %s2075 = smul.addr %s2071, 128
          %s2076 = scalar_lea.hbm %s13, %s2075
          %s2077 = sshll.u32 %s2062, 4
          %s2078 = int_to_ptr.vmem [resolvable:$true] %s2077
          %2083 = dma.vmem_to_hbm [thread:$0]  %s2078, 256, %s2076, %s2059, 128, 128, 8
        $region128: #{tpu_custom_call.1} parent=71 // pred_fallthru
          _
        // Predicated region
        $region129: #{tpu_custom_call.1} parent=71 // pred_check
          %p2084 = pneg %p382
        $region130: #{tpu_custom_call.1} parent=71 // pred_check_branch
          %2086 = sbr.rel (%p2084) target = $region132
        $region131: #{tpu_custom_call.1} parent=71 // pred_region
          %s2087 = smul.u32 2, %s45
          %s2089 = ssub.s32 512, 512
          %2090 = vsyncadd %s2064, %s2089
          %s2091 = smul.addr %s2087, 4
          %s2092 = smul.addr %s2091, 64
          %s2093 = scalar_lea.hbm %s14, %s2092
          %s2094 = sshll.u32 %s2067, 4
          %s2095 = int_to_ptr.vmem [resolvable:$true] %s2094
          %2100 = dma.vmem_to_hbm [thread:$0]  %s2095, 512, %s2093, %s2064, 64, 64, 4
        $region132: #{tpu_custom_call.1} parent=71 // pred_fallthru
          _
      $region72: #{tpu_custom_call.1} parent=5 // pred_fallthru
        _
      %p2101 = scmp.le.s32.totalorder 2, %s40
      // Predicated region
      $region133: #{tpu_custom_call.1} parent=5 // pred_check
        %p2102 = pneg %p2101
      $region134: #{tpu_custom_call.1} parent=5 // pred_check_branch
        %2104 = sbr.rel (%p2102) target = $region136
      $region135: #{tpu_custom_call.1} parent=5 // pred_region
        %s2105 = ssub.s32 %s40, 2
        // Predicated region
        $region137: #{tpu_custom_call.1} parent=135 // pred_check
          %p2106 = pneg %p362
        $region138: #{tpu_custom_call.1} parent=135 // pred_check_branch
          %2108 = sbr.rel (%p2106) target = $region140
        $region139: #{tpu_custom_call.1} parent=135 // pred_region
          %s2109 = sand.u32 %s347, 1
          %s2110 = scalar_lea.sflag [#allocation4], %s2109
          %s2111 = sand.u32 %s347, 1
          %s2112 = smul.addr %s2111, 16
          %s2113 = scalar_lea.vmem [#allocation23], %s2112
          %2114 = dma.done %s2110, 256
        $region140: #{tpu_custom_call.1} parent=135 // pred_fallthru
          _
        // Predicated region
        $region141: #{tpu_custom_call.1} parent=135 // pred_check
          %p2115 = pneg %p388
        $region142: #{tpu_custom_call.1} parent=135 // pred_check_branch
          %2117 = sbr.rel (%p2115) target = $region144
        $region143: #{tpu_custom_call.1} parent=135 // pred_region
          %s2118 = sand.u32 %s373, 1
          %s2119 = scalar_lea.sflag [#allocation25], %s2118
          %s2120 = sand.u32 %s373, 1
          %s2121 = smul.addr %s2120, 32
          %s2122 = scalar_lea.vmem [#allocation24], %s2121
          %2123 = dma.done %s2119, 512
        $region144: #{tpu_custom_call.1} parent=135 // pred_fallthru
          _
      $region136: #{tpu_custom_call.1} parent=5 // pred_fallthru
        _
    $region6: #{tpu_custom_call.1} parent=1 // loop_footer
      %s44 = sadd.s32 1, %s40
    $region7: #{tpu_custom_call.1} parent=1 // loop_footer_branch
      %39 = sbr.rel target = $region3
    $region8: #{tpu_custom_call.1} parent=1 // loop_exit
      _
    %2124 = vsyncpa [#allocation3], 1
    %s2125 = scalar_lea.sflag [#allocation3], 1
    %2126 = vsyncpa %s2125, 1
    %2127 = vsyncpa [#allocation6], 1
    %s2128 = scalar_lea.sflag [#allocation6], 1
    %2129 = vsyncpa %s2128, 1
    %2130 = vsyncpa [#allocation9], 1
    %s2131 = scalar_lea.sflag [#allocation9], 1
    %2132 = vsyncpa %s2131, 1
    %2133 = vsyncpa [#allocation12], 1
    %2134 = vsyncpa [#allocation15], 1
    %2135 = vsyncpa [#allocation18], 1
    %2136 = vsyncpa [#allocation21], 1
    %2137 = vsyncpa [#allocation4], 1
    %s2138 = scalar_lea.sflag [#allocation4], 1
    %2139 = vsyncpa %s2138, 1
    %2140 = vsyncpa [#allocation25], 1
    %s2141 = scalar_lea.sflag [#allocation25], 1
    %2142 = vsyncpa %s2141, 1

</llo_original>
